<compile_context>
chip_gen: v5e
topology: v5e:2x2
jax: 0.10.0
libtpu: 0.0.40
codegen_flags: <defaults>
</compile_context>

<pallas_src>
import jax
import jax.numpy as jnp
from jax.experimental import pallas as pl
from jax.experimental.pallas import tpu as pltpu


def _round_up(x, m):
    return ((x + m - 1) // m) * m


# ----------------------------------------------------------------------------
# Pallas kernels
# ----------------------------------------------------------------------------
def _conv_relu_pool_kernel(a0, a1, a2, a3, w_ref, b_ref, o_ref):
    """out = max over 4 pool-window offsets of relu(patches @ W + b)."""
    w = w_ref[...]
    b = b_ref[...]                      # (1, Np) broadcasts over rows

    def branch(a_ref):
        acc = jnp.dot(a_ref[...], w, preferred_element_type=jnp.float32)
        return jnp.maximum(acc + b, 0.0)

    o_ref[...] = jnp.maximum(
        jnp.maximum(branch(a0), branch(a1)),
        jnp.maximum(branch(a2), branch(a3)),
    ).astype(o_ref.dtype)


def _fc_fused_kernel(x_ref, w1_ref, b1_ref, w2_ref, b2_ref, w3_ref, b3_ref,
                     o_ref):
    """fc1+ReLU -> fc2+ReLU -> fc3, all in one kernel body."""
    h = jnp.dot(x_ref[...], w1_ref[...], preferred_element_type=jnp.float32)
    h = jnp.maximum(h + b1_ref[...], 0.0)
    h = jnp.dot(h, w2_ref[...], preferred_element_type=jnp.float32)
    h = jnp.maximum(h + b2_ref[...], 0.0)
    o = jnp.dot(h, w3_ref[...], preferred_element_type=jnp.float32) + b3_ref[...]
    o_ref[...] = o.astype(o_ref.dtype)


# ----------------------------------------------------------------------------
# Host-side glue (XLA): pool-window-grouped im2col in NHWC layout
# ----------------------------------------------------------------------------
def im2col_pool_views(x_nhwc, k):
    """x: (N, H, W, C) NHWC.  Returns 4 patch matrices, one per 2x2 pool-window
    offset (wi, wj), each of shape (N*PH*PW, k*k*C) with rows ordered
    (n, ph, pw) (= pooled output positions) and columns ordered (i, j, c)."""
    N, H, W, C = x_nhwc.shape
    OH, OW = H - k + 1, W - k + 1
    PH, PW = OH // 2, OW // 2
    mats = []
    for wi in range(2):
        for wj in range(2):
            views = []
            for i in range(k):
                for j in range(k):
                    r0, c0 = wi + i, wj + j
                    v = x_nhwc[:, r0:r0 + 2 * PH - 1:2,
                                  c0:c0 + 2 * PW - 1:2, :]      # (N, PH, PW, C)
                    views.append(v)
            p = jnp.stack(views, axis=3)                         # (N,PH,PW,k*k,C)
            mats.append(p.reshape(N * PH * PW, k * k * C))
    return mats, PH, PW


def conv_relu_pool(x_nhwc, conv_w, conv_b, *, grid_m=1):
    """Fused valid conv (stride 1) + bias + ReLU + 2x2/2 maxpool.

    Returns (out, PH, PW, OC) where out is [N*PH*PW, 128·ceil(OC/128)] f32 with
    channels on lanes (lane padding kept; row padding sliced off)."""
    N, H, W, C = x_nhwc.shape
    OC, IC, k, _ = conv_w.shape
    mats, PH, PW = im2col_pool_views(x_nhwc, k)

    M = N * PH * PW
    K = k * k * C
    Mp = _round_up(M, 8 * grid_m)
    Kp = _round_up(K, 128)
    Np = _round_up(OC, 128)
    tm = Mp // grid_m

    mats_p = [jnp.pad(m.astype(jnp.float32), ((0, Mp - M), (0, Kp - K)))
              for m in mats]
    # Patch column order is (i, j, c) -> weight rows must match: (k, k, IC, OC).
    w = conv_w.astype(jnp.float32).transpose(2, 3, 1, 0).reshape(K, OC)
    wp = jnp.pad(w, ((0, Kp - K), (0, Np - OC)))
    bp = jnp.pad(conv_b.astype(jnp.float32).reshape(1, -1),
                 ((0, 0), (0, Np - OC)))

    out = pl.pallas_call(
        _conv_relu_pool_kernel,
        out_shape=jax.ShapeDtypeStruct((Mp, Np), jnp.float32),
        grid=(grid_m,),
        in_specs=[pl.BlockSpec((tm, Kp), lambda i: (i, 0)) for _ in range(4)]
        + [pl.BlockSpec((Kp, Np), lambda i: (0, 0)),
           pl.BlockSpec((1, Np), lambda i: (0, 0))],
        out_specs=pl.BlockSpec((tm, Np), lambda i: (i, 0)),
        compiler_params=pltpu.CompilerParams(dimension_semantics=("parallel",)),
    )(*mats_p, wp, bp)
    return out[:M], PH, PW, OC


def fc_fused(x, w1, b1, w2, b2, w3, b3):
    """x:[M,K1] -> relu(x@w1+b1) -> relu(.@w2+b2) -> .@w3+b3, one pallas_call."""
    M, K1 = x.shape
    N1, N2, N3 = w1.shape[1], w2.shape[1], w3.shape[1]
    Mp = _round_up(M, 8)
    K1p, N1p = _round_up(K1, 128), _round_up(N1, 128)
    N2p, N3p = _round_up(N2, 128), _round_up(N3, 128)

    f32 = jnp.float32
    xp = jnp.pad(x.astype(f32), ((0, Mp - M), (0, K1p - K1)))
    w1p = jnp.pad(w1.astype(f32), ((0, K1p - K1), (0, N1p - N1)))
    b1p = jnp.pad(b1.astype(f32).reshape(1, -1), ((0, 0), (0, N1p - N1)))
    w2p = jnp.pad(w2.astype(f32), ((0, N1p - N1), (0, N2p - N2)))
    b2p = jnp.pad(b2.astype(f32).reshape(1, -1), ((0, 0), (0, N2p - N2)))
    w3p = jnp.pad(w3.astype(f32), ((0, N2p - N2), (0, N3p - N3)))
    b3p = jnp.pad(b3.astype(f32).reshape(1, -1), ((0, 0), (0, N3p - N3)))

    out = pl.pallas_call(
        _fc_fused_kernel,
        out_shape=jax.ShapeDtypeStruct((Mp, N3p), jnp.float32),
        grid=(1,),
        in_specs=[
            pl.BlockSpec((Mp, K1p), lambda i: (0, 0)),
            pl.BlockSpec((K1p, N1p), lambda i: (0, 0)),
            pl.BlockSpec((1, N1p), lambda i: (0, 0)),
            pl.BlockSpec((N1p, N2p), lambda i: (0, 0)),
            pl.BlockSpec((1, N2p), lambda i: (0, 0)),
            pl.BlockSpec((N2p, N3p), lambda i: (0, 0)),
            pl.BlockSpec((1, N3p), lambda i: (0, 0)),
        ],
        out_specs=pl.BlockSpec((Mp, N3p), lambda i: (0, 0)),
    )(xp, w1p, b1p, w2p, b2p, w3p, b3p)
    return out[:M, :N3]


# ----------------------------------------------------------------------------
# Parameters (mirrors PyTorch default U(-1/sqrt(fan_in), +) init)
# ----------------------------------------------------------------------------
def init_params(key):
    def uniform(k, shape, fan_in):
        bound = 1.0 / jnp.sqrt(float(fan_in))
        return jax.random.uniform(k, shape, jnp.float32, -bound, bound)

    keys = jax.random.split(key, 10)
    return {
        "conv1_w": uniform(keys[0], (6, 3, 5, 5), 3 * 5 * 5),
        "conv1_b": uniform(keys[1], (6,), 3 * 5 * 5),
        "conv2_w": uniform(keys[2], (16, 6, 5, 5), 6 * 5 * 5),
        "conv2_b": uniform(keys[3], (16,), 6 * 5 * 5),
        "fc1_w": uniform(keys[4], (120, 400), 400),
        "fc1_b": uniform(keys[5], (120,), 400),
        "fc2_w": uniform(keys[6], (84, 120), 120),
        "fc2_b": uniform(keys[7], (84,), 120),
        "fc3_w": uniform(keys[8], (10, 84), 84),
        "fc3_b": uniform(keys[9], (10,), 84),
    }


# ----------------------------------------------------------------------------
# Forward pass (semantically identical to Net.forward)
# ----------------------------------------------------------------------------
def net_forward(params, x):
    N = x.shape[0]
    x_nhwc = jnp.transpose(x, (0, 2, 3, 1))            # one NCHW->NHWC at entry

    # conv1 + ReLU + pool (fused); 2 parallel grid steps so v7x's 2nd TC helps.
    y, PH, PW, OC = conv_relu_pool(x_nhwc, params["conv1_w"], params["conv1_b"],
                                   grid_m=2)
    y_nhwc = y[:, :OC].reshape(N, PH, PW, OC)          # (N, 14, 14, 6)

    # conv2 + ReLU + pool (fused); tiny problem -> single grid step.
    y, PH, PW, OC = conv_relu_pool(y_nhwc, params["conv2_w"], params["conv2_b"],
                                   grid_m=1)
    flat = y[:, :OC].reshape(N, PH * PW * OC)          # (N, 400) in (h, w, c)

    # torch's .view(-1, 16*5*5) flattens NCHW as (c, h, w); permute fc1 weight
    # columns once to match our NHWC (h, w, c) flatten.
    w1 = (params["fc1_w"].reshape(120, 16, 5, 5)
          .transpose(0, 2, 3, 1).reshape(120, 400)).T   # (400, 120)
    out = fc_fused(flat, w1, params["fc1_b"],
                   params["fc2_w"].T, params["fc2_b"],
                   params["fc3_w"].T, params["fc3_b"])
    return out                                          # (N, 10)


# ----------------------------------------------------------------------------
# Pure-JAX reference for a correctness check
# ----------------------------------------------------------------------------
def net_forward_reference(params, x):
    hi = jax.lax.Precision.HIGHEST
    dn = ("NCHW", "OIHW", "NCHW")
    y = jax.lax.conv_general_dilated(x, params["conv1_w"], (1, 1), "VALID",
                                     dimension_numbers=dn, precision=hi)
    y = jnp.maximum(y + params["conv1_b"][None, :, None, None], 0.0)
    y = jax.lax.reduce_window(y, -jnp.inf, jax.lax.max,
                              (1, 1, 2, 2), (1, 1, 2, 2), "VALID")
    y = jax.lax.conv_general_dilated(y, params["conv2_w"], (1, 1), "VALID",
                                     dimension_numbers=dn, precision=hi)
    y = jnp.maximum(y + params["conv2_b"][None, :, None, None], 0.0)
    y = jax.lax.reduce_window(y, -jnp.inf, jax.lax.max,
                              (1, 1, 2, 2), (1, 1, 2, 2), "VALID")
    flat = y.reshape(x.shape[0], -1)                    # NCHW (c, h, w) flatten
    h = jnp.maximum(jnp.dot(flat, params["fc1_w"].T, precision=hi)
                    + params["fc1_b"], 0.0)
    h = jnp.maximum(jnp.dot(h, params["fc2_w"].T, precision=hi)
                    + params["fc2_b"], 0.0)
    return jnp.dot(h, params["fc3_w"].T, precision=hi) + params["fc3_b"]


if __name__ == "__main__":
    key = jax.random.PRNGKey(0)
    k_param, k_x = jax.random.split(key)
    params = init_params(k_param)
    # The module's fc1 (16*5*5) forces 32x32 spatial input; small batch of 2.
    x = jax.random.normal(k_x, (2, 3, 32, 32), dtype=jnp.float32)

    fwd = jax.jit(net_forward)
    out = fwd(params, x)
    jax.block_until_ready(out)
    assert out.shape == (2, 10) and out.dtype == jnp.float32

    ref = jax.jit(net_forward_reference)(params, x)
    jax.block_until_ready(ref)
    assert bool(jnp.all(jnp.isfinite(out)))
    assert bool(jnp.allclose(out, ref, atol=2e-2, rtol=2e-2)), (
        f"max abs diff {float(jnp.max(jnp.abs(out - ref)))}")
    print("KERNEL_OK")
</pallas_src>

<mosaic_0001>
module attributes {stable_mosaic.version = 11 : i64} {
  func.func @_conv_relu_pool_kernel(%arg0: i32, %arg1: memref<200x128xf32, #tpu.memory_space<vmem>>, %arg2: memref<200x128xf32, #tpu.memory_space<vmem>>, %arg3: memref<200x128xf32, #tpu.memory_space<vmem>>, %arg4: memref<200x128xf32, #tpu.memory_space<vmem>>, %arg5: memref<128x128xf32, #tpu.memory_space<vmem>>, %arg6: memref<1x128xf32, #tpu.memory_space<vmem>>, %arg7: memref<200x128xf32, #tpu.memory_space<vmem>>) attributes {dimension_semantics = [#tpu.dimension_semantics<parallel>], iteration_bounds = array<i64: 2>, scalar_prefetch = 0 : i64, scratch_operands = 0 : i64, tpu.core_type = #tpu.core_type<tc>, window_params = [{transform_indices = @transform_0, window_bounds = array<i64: 200, 128>}, {transform_indices = @transform_1, window_bounds = array<i64: 200, 128>}, {transform_indices = @transform_2, window_bounds = array<i64: 200, 128>}, {transform_indices = @transform_3, window_bounds = array<i64: 200, 128>}, {pipeline_mode = #tpu.pipeline_mode<synchronous>, transform_indices = @transform_4, window_bounds = array<i64: 128, 128>}, {pipeline_mode = #tpu.pipeline_mode<synchronous>, transform_indices = @transform_5, window_bounds = array<i64: 1, 128>}, {transform_indices = @transform_6, window_bounds = array<i64: 200, 128>}]} {
    %c0 = arith.constant 0 : index
    %c0_0 = arith.constant 0 : index
    %0 = vector.load %arg5[%c0, %c0_0] : memref<128x128xf32, #tpu.memory_space<vmem>>, vector<128x128xf32>
    %c0_1 = arith.constant 0 : index
    %c0_2 = arith.constant 0 : index
    %1 = vector.load %arg6[%c0_1, %c0_2] : memref<1x128xf32, #tpu.memory_space<vmem>>, vector<1x128xf32>
    %c0_3 = arith.constant 0 : index
    %c0_4 = arith.constant 0 : index
    %2 = vector.load %arg1[%c0_3, %c0_4] : memref<200x128xf32, #tpu.memory_space<vmem>>, vector<200x128xf32>
    %cst = arith.constant dense<0.000000e+00> : vector<200x128xf32>
    %3 = tpu.matmul %2, %0, %cst {dimension_numbers = #tpu.dot_dimension_numbers<[1], [0], [0], [1], [0, 0, 1, 1], [], []>} : vector<200x128xf32>, vector<128x128xf32>, vector<200x128xf32> -> vector<200x128xf32>
    %4 = vector.broadcast %1 : vector<1x128xf32> to vector<200x128xf32>
    %5 = arith.addf %3, %4 : vector<200x128xf32>
    %cst_5 = arith.constant 0.000000e+00 : f32
    %6 = vector.broadcast %cst_5 : f32 to vector<200x128xf32>
    %7 = arith.maximumf %5, %6 : vector<200x128xf32>
    %c0_6 = arith.constant 0 : index
    %c0_7 = arith.constant 0 : index
    %8 = vector.load %arg2[%c0_6, %c0_7] : memref<200x128xf32, #tpu.memory_space<vmem>>, vector<200x128xf32>
    %cst_8 = arith.constant dense<0.000000e+00> : vector<200x128xf32>
    %9 = tpu.matmul %8, %0, %cst_8 {dimension_numbers = #tpu.dot_dimension_numbers<[1], [0], [0], [1], [0, 0, 1, 1], [], []>} : vector<200x128xf32>, vector<128x128xf32>, vector<200x128xf32> -> vector<200x128xf32>
    %10 = vector.broadcast %1 : vector<1x128xf32> to vector<200x128xf32>
    %11 = arith.addf %9, %10 : vector<200x128xf32>
    %cst_9 = arith.constant 0.000000e+00 : f32
    %12 = vector.broadcast %cst_9 : f32 to vector<200x128xf32>
    %13 = arith.maximumf %11, %12 : vector<200x128xf32>
    %14 = arith.maximumf %7, %13 : vector<200x128xf32>
    %c0_10 = arith.constant 0 : index
    %c0_11 = arith.constant 0 : index
    %15 = vector.load %arg3[%c0_10, %c0_11] : memref<200x128xf32, #tpu.memory_space<vmem>>, vector<200x128xf32>
    %cst_12 = arith.constant dense<0.000000e+00> : vector<200x128xf32>
    %16 = tpu.matmul %15, %0, %cst_12 {dimension_numbers = #tpu.dot_dimension_numbers<[1], [0], [0], [1], [0, 0, 1, 1], [], []>} : vector<200x128xf32>, vector<128x128xf32>, vector<200x128xf32> -> vector<200x128xf32>
    %17 = vector.broadcast %1 : vector<1x128xf32> to vector<200x128xf32>
    %18 = arith.addf %16, %17 : vector<200x128xf32>
    %cst_13 = arith.constant 0.000000e+00 : f32
    %19 = vector.broadcast %cst_13 : f32 to vector<200x128xf32>
    %20 = arith.maximumf %18, %19 : vector<200x128xf32>
    %c0_14 = arith.constant 0 : index
    %c0_15 = arith.constant 0 : index
    %21 = vector.load %arg4[%c0_14, %c0_15] : memref<200x128xf32, #tpu.memory_space<vmem>>, vector<200x128xf32>
    %cst_16 = arith.constant dense<0.000000e+00> : vector<200x128xf32>
    %22 = tpu.matmul %21, %0, %cst_16 {dimension_numbers = #tpu.dot_dimension_numbers<[1], [0], [0], [1], [0, 0, 1, 1], [], []>} : vector<200x128xf32>, vector<128x128xf32>, vector<200x128xf32> -> vector<200x128xf32>
    %23 = vector.broadcast %1 : vector<1x128xf32> to vector<200x128xf32>
    %24 = arith.addf %22, %23 : vector<200x128xf32>
    %cst_17 = arith.constant 0.000000e+00 : f32
    %25 = vector.broadcast %cst_17 : f32 to vector<200x128xf32>
    %26 = arith.maximumf %24, %25 : vector<200x128xf32>
    %27 = arith.maximumf %20, %26 : vector<200x128xf32>
    %28 = arith.maximumf %14, %27 : vector<200x128xf32>
    %c0_18 = arith.constant 0 : index
    %c0_19 = arith.constant 0 : index
    %29 = vector.load %arg7[%c0_18, %c0_19] : memref<200x128xf32, #tpu.memory_space<vmem>>, vector<200x128xf32>
    tpu.vector_store %arg7[%c0_18, %c0_19], %28 {strides = array<i32>} : memref<200x128xf32, #tpu.memory_space<vmem>>, vector<200x128xf32>,
    return
  }
  func.func @transform_0(%arg0: i32) -> (i32, i32) {
    %c0_i32 = arith.constant 0 : i32
    %c0_i32_0 = arith.constant 0 : i32
    return %arg0, %c0_i32 : i32, i32
  }
  func.func @transform_1(%arg0: i32) -> (i32, i32) {
    %c0_i32 = arith.constant 0 : i32
    %c0_i32_0 = arith.constant 0 : i32
    return %arg0, %c0_i32 : i32, i32
  }
  func.func @transform_2(%arg0: i32) -> (i32, i32) {
    %c0_i32 = arith.constant 0 : i32
    %c0_i32_0 = arith.constant 0 : i32
    return %arg0, %c0_i32 : i32, i32
  }
  func.func @transform_3(%arg0: i32) -> (i32, i32) {
    %c0_i32 = arith.constant 0 : i32
    %c0_i32_0 = arith.constant 0 : i32
    return %arg0, %c0_i32 : i32, i32
  }
  func.func @transform_4(%arg0: i32) -> (i32, i32) {
    %c0_i32 = arith.constant 0 : i32
    %c0_i32_0 = arith.constant 0 : i32
    %c0_i32_1 = arith.constant 0 : i32
    return %c0_i32, %c0_i32_0 : i32, i32
  }
  func.func @transform_5(%arg0: i32) -> (i32, i32) {
    %c0_i32 = arith.constant 0 : i32
    %c0_i32_0 = arith.constant 0 : i32
    %c0_i32_1 = arith.constant 0 : i32
    return %c0_i32, %c0_i32_0 : i32, i32
  }
  func.func @transform_6(%arg0: i32) -> (i32, i32) {
    %c0_i32 = arith.constant 0 : i32
    %c0_i32_0 = arith.constant 0 : i32
    return %arg0, %c0_i32 : i32, i32
  }
}

module attributes {stable_mosaic.version = 11 : i64} {
  func.func @_conv_relu_pool_kernel(%arg0: i32, %arg1: memref<56x256xf32, #tpu.memory_space<vmem>>, %arg2: memref<56x256xf32, #tpu.memory_space<vmem>>, %arg3: memref<56x256xf32, #tpu.memory_space<vmem>>, %arg4: memref<56x256xf32, #tpu.memory_space<vmem>>, %arg5: memref<256x128xf32, #tpu.memory_space<vmem>>, %arg6: memref<1x128xf32, #tpu.memory_space<vmem>>, %arg7: memref<56x128xf32, #tpu.memory_space<vmem>>) attributes {dimension_semantics = [#tpu.dimension_semantics<parallel>], iteration_bounds = array<i64: 1>, scalar_prefetch = 0 : i64, scratch_operands = 0 : i64, tpu.core_type = #tpu.core_type<tc>, window_params = [{transform_indices = @transform_0, window_bounds = array<i64: 56, 256>}, {transform_indices = @transform_1, window_bounds = array<i64: 56, 256>}, {transform_indices = @transform_2, window_bounds = array<i64: 56, 256>}, {transform_indices = @transform_3, window_bounds = array<i64: 56, 256>}, {pipeline_mode = #tpu.pipeline_mode<synchronous>, transform_indices = @transform_4, window_bounds = array<i64: 256, 128>}, {pipeline_mode = #tpu.pipeline_mode<synchronous>, transform_indices = @transform_5, window_bounds = array<i64: 1, 128>}, {transform_indices = @transform_6, window_bounds = array<i64: 56, 128>}]} {
    %c0 = arith.constant 0 : index
    %c0_0 = arith.constant 0 : index
    %0 = vector.load %arg5[%c0, %c0_0] : memref<256x128xf32, #tpu.memory_space<vmem>>, vector<256x128xf32>
    %c0_1 = arith.constant 0 : index
    %c0_2 = arith.constant 0 : index
    %1 = vector.load %arg6[%c0_1, %c0_2] : memref<1x128xf32, #tpu.memory_space<vmem>>, vector<1x128xf32>
    %c0_3 = arith.constant 0 : index
    %c0_4 = arith.constant 0 : index
    %2 = vector.load %arg1[%c0_3, %c0_4] : memref<56x256xf32, #tpu.memory_space<vmem>>, vector<56x256xf32>
    %cst = arith.constant dense<0.000000e+00> : vector<56x128xf32>
    %3 = tpu.matmul %2, %0, %cst {dimension_numbers = #tpu.dot_dimension_numbers<[1], [0], [0], [1], [0, 0, 1, 1], [], []>} : vector<56x256xf32>, vector<256x128xf32>, vector<56x128xf32> -> vector<56x128xf32>
    %4 = vector.broadcast %1 : vector<1x128xf32> to vector<56x128xf32>
    %5 = arith.addf %3, %4 : vector<56x128xf32>
    %cst_5 = arith.constant 0.000000e+00 : f32
    %6 = vector.broadcast %cst_5 : f32 to vector<56x128xf32>
    %7 = arith.maximumf %5, %6 : vector<56x128xf32>
    %c0_6 = arith.constant 0 : index
    %c0_7 = arith.constant 0 : index
    %8 = vector.load %arg2[%c0_6, %c0_7] : memref<56x256xf32, #tpu.memory_space<vmem>>, vector<56x256xf32>
    %cst_8 = arith.constant dense<0.000000e+00> : vector<56x128xf32>
    %9 = tpu.matmul %8, %0, %cst_8 {dimension_numbers = #tpu.dot_dimension_numbers<[1], [0], [0], [1], [0, 0, 1, 1], [], []>} : vector<56x256xf32>, vector<256x128xf32>, vector<56x128xf32> -> vector<56x128xf32>
    %10 = vector.broadcast %1 : vector<1x128xf32> to vector<56x128xf32>
    %11 = arith.addf %9, %10 : vector<56x128xf32>
    %cst_9 = arith.constant 0.000000e+00 : f32
    %12 = vector.broadcast %cst_9 : f32 to vector<56x128xf32>
    %13 = arith.maximumf %11, %12 : vector<56x128xf32>
    %14 = arith.maximumf %7, %13 : vector<56x128xf32>
    %c0_10 = arith.constant 0 : index
    %c0_11 = arith.constant 0 : index
    %15 = vector.load %arg3[%c0_10, %c0_11] : memref<56x256xf32, #tpu.memory_space<vmem>>, vector<56x256xf32>
    %cst_12 = arith.constant dense<0.000000e+00> : vector<56x128xf32>
    %16 = tpu.matmul %15, %0, %cst_12 {dimension_numbers = #tpu.dot_dimension_numbers<[1], [0], [0], [1], [0, 0, 1, 1], [], []>} : vector<56x256xf32>, vector<256x128xf32>, vector<56x128xf32> -> vector<56x128xf32>
    %17 = vector.broadcast %1 : vector<1x128xf32> to vector<56x128xf32>
    %18 = arith.addf %16, %17 : vector<56x128xf32>
    %cst_13 = arith.constant 0.000000e+00 : f32
    %19 = vector.broadcast %cst_13 : f32 to vector<56x128xf32>
    %20 = arith.maximumf %18, %19 : vector<56x128xf32>
    %c0_14 = arith.constant 0 : index
    %c0_15 = arith.constant 0 : index
    %21 = vector.load %arg4[%c0_14, %c0_15] : memref<56x256xf32, #tpu.memory_space<vmem>>, vector<56x256xf32>
    %cst_16 = arith.constant dense<0.000000e+00> : vector<56x128xf32>
    %22 = tpu.matmul %21, %0, %cst_16 {dimension_numbers = #tpu.dot_dimension_numbers<[1], [0], [0], [1], [0, 0, 1, 1], [], []>} : vector<56x256xf32>, vector<256x128xf32>, vector<56x128xf32> -> vector<56x128xf32>
    %23 = vector.broadcast %1 : vector<1x128xf32> to vector<56x128xf32>
    %24 = arith.addf %22, %23 : vector<56x128xf32>
    %cst_17 = arith.constant 0.000000e+00 : f32
    %25 = vector.broadcast %cst_17 : f32 to vector<56x128xf32>
    %26 = arith.maximumf %24, %25 : vector<56x128xf32>
    %27 = arith.maximumf %20, %26 : vector<56x128xf32>
    %28 = arith.maximumf %14, %27 : vector<56x128xf32>
    %c0_18 = arith.constant 0 : index
    %c0_19 = arith.constant 0 : index
    %29 = vector.load %arg7[%c0_18, %c0_19] : memref<56x128xf32, #tpu.memory_space<vmem>>, vector<56x128xf32>
    tpu.vector_store %arg7[%c0_18, %c0_19], %28 {strides = array<i32>} : memref<56x128xf32, #tpu.memory_space<vmem>>, vector<56x128xf32>,
    return
  }
  func.func @transform_0(%arg0: i32) -> (i32, i32) {
    %c0_i32 = arith.constant 0 : i32
    %c0_i32_0 = arith.constant 0 : i32
    return %arg0, %c0_i32 : i32, i32
  }
  func.func @transform_1(%arg0: i32) -> (i32, i32) {
    %c0_i32 = arith.constant 0 : i32
    %c0_i32_0 = arith.constant 0 : i32
    return %arg0, %c0_i32 : i32, i32
  }
  func.func @transform_2(%arg0: i32) -> (i32, i32) {
    %c0_i32 = arith.constant 0 : i32
    %c0_i32_0 = arith.constant 0 : i32
    return %arg0, %c0_i32 : i32, i32
  }
  func.func @transform_3(%arg0: i32) -> (i32, i32) {
    %c0_i32 = arith.constant 0 : i32
    %c0_i32_0 = arith.constant 0 : i32
    return %arg0, %c0_i32 : i32, i32
  }
  func.func @transform_4(%arg0: i32) -> (i32, i32) {
    %c0_i32 = arith.constant 0 : i32
    %c0_i32_0 = arith.constant 0 : i32
    %c0_i32_1 = arith.constant 0 : i32
    return %c0_i32, %c0_i32_0 : i32, i32
  }
  func.func @transform_5(%arg0: i32) -> (i32, i32) {
    %c0_i32 = arith.constant 0 : i32
    %c0_i32_0 = arith.constant 0 : i32
    %c0_i32_1 = arith.constant 0 : i32
    return %c0_i32, %c0_i32_0 : i32, i32
  }
  func.func @transform_6(%arg0: i32) -> (i32, i32) {
    %c0_i32 = arith.constant 0 : i32
    %c0_i32_0 = arith.constant 0 : i32
    return %arg0, %c0_i32 : i32, i32
  }
}

module attributes {stable_mosaic.version = 11 : i64} {
  func.func @_fc_fused_kernel(%arg0: i32, %arg1: memref<8x512xf32, #tpu.memory_space<vmem>>, %arg2: memref<512x128xf32, #tpu.memory_space<vmem>>, %arg3: memref<1x128xf32, #tpu.memory_space<vmem>>, %arg4: memref<128x128xf32, #tpu.memory_space<vmem>>, %arg5: memref<1x128xf32, #tpu.memory_space<vmem>>, %arg6: memref<128x128xf32, #tpu.memory_space<vmem>>, %arg7: memref<1x128xf32, #tpu.memory_space<vmem>>, %arg8: memref<8x128xf32, #tpu.memory_space<vmem>>) attributes {dimension_semantics = [#tpu.dimension_semantics<arbitrary>], iteration_bounds = array<i64: 1>, scalar_prefetch = 0 : i64, scratch_operands = 0 : i64, tpu.core_type = #tpu.core_type<tc>, window_params = [{pipeline_mode = #tpu.pipeline_mode<synchronous>, transform_indices = @transform_0, window_bounds = array<i64: 8, 512>}, {pipeline_mode = #tpu.pipeline_mode<synchronous>, transform_indices = @transform_1, window_bounds = array<i64: 512, 128>}, {pipeline_mode = #tpu.pipeline_mode<synchronous>, transform_indices = @transform_2, window_bounds = array<i64: 1, 128>}, {pipeline_mode = #tpu.pipeline_mode<synchronous>, transform_indices = @transform_3, window_bounds = array<i64: 128, 128>}, {pipeline_mode = #tpu.pipeline_mode<synchronous>, transform_indices = @transform_4, window_bounds = array<i64: 1, 128>}, {pipeline_mode = #tpu.pipeline_mode<synchronous>, transform_indices = @transform_5, window_bounds = array<i64: 128, 128>}, {pipeline_mode = #tpu.pipeline_mode<synchronous>, transform_indices = @transform_6, window_bounds = array<i64: 1, 128>}, {pipeline_mode = #tpu.pipeline_mode<synchronous>, transform_indices = @transform_7, window_bounds = array<i64: 8, 128>}]} {
    %c0 = arith.constant 0 : index
    %c0_0 = arith.constant 0 : index
    %0 = vector.load %arg1[%c0, %c0_0] : memref<8x512xf32, #tpu.memory_space<vmem>>, vector<8x512xf32>
    %c0_1 = arith.constant 0 : index
    %c0_2 = arith.constant 0 : index
    %1 = vector.load %arg2[%c0_1, %c0_2] : memref<512x128xf32, #tpu.memory_space<vmem>>, vector<512x128xf32>
    %cst = arith.constant dense<0.000000e+00> : vector<8x128xf32>
    %2 = tpu.matmul %0, %1, %cst {dimension_numbers = #tpu.dot_dimension_numbers<[1], [0], [0], [1], [0, 0, 1, 1], [], []>} : vector<8x512xf32>, vector<512x128xf32>, vector<8x128xf32> -> vector<8x128xf32>
    %c0_3 = arith.constant 0 : index
    %c0_4 = arith.constant 0 : index
    %3 = vector.load %arg3[%c0_3, %c0_4] : memref<1x128xf32, #tpu.memory_space<vmem>>, vector<1x128xf32>
    %4 = vector.broadcast %3 : vector<1x128xf32> to vector<8x128xf32>
    %5 = arith.addf %2, %4 : vector<8x128xf32>
    %cst_5 = arith.constant 0.000000e+00 : f32
    %6 = vector.broadcast %cst_5 : f32 to vector<8x128xf32>
    %7 = arith.maximumf %5, %6 : vector<8x128xf32>
    %c0_6 = arith.constant 0 : index
    %c0_7 = arith.constant 0 : index
    %8 = vector.load %arg4[%c0_6, %c0_7] : memref<128x128xf32, #tpu.memory_space<vmem>>, vector<128x128xf32>
    %cst_8 = arith.constant dense<0.000000e+00> : vector<8x128xf32>
    %9 = tpu.matmul %7, %8, %cst_8 {dimension_numbers = #tpu.dot_dimension_numbers<[1], [0], [0], [1], [0, 0, 1, 1], [], []>} : vector<8x128xf32>, vector<128x128xf32>, vector<8x128xf32> -> vector<8x128xf32>
    %c0_9 = arith.constant 0 : index
    %c0_10 = arith.constant 0 : index
    %10 = vector.load %arg5[%c0_9, %c0_10] : memref<1x128xf32, #tpu.memory_space<vmem>>, vector<1x128xf32>
    %11 = vector.broadcast %10 : vector<1x128xf32> to vector<8x128xf32>
    %12 = arith.addf %9, %11 : vector<8x128xf32>
    %cst_11 = arith.constant 0.000000e+00 : f32
    %13 = vector.broadcast %cst_11 : f32 to vector<8x128xf32>
    %14 = arith.maximumf %12, %13 : vector<8x128xf32>
    %c0_12 = arith.constant 0 : index
    %c0_13 = arith.constant 0 : index
    %15 = vector.load %arg6[%c0_12, %c0_13] : memref<128x128xf32, #tpu.memory_space<vmem>>, vector<128x128xf32>
    %cst_14 = arith.constant dense<0.000000e+00> : vector<8x128xf32>
    %16 = tpu.matmul %14, %15, %cst_14 {dimension_numbers = #tpu.dot_dimension_numbers<[1], [0], [0], [1], [0, 0, 1, 1], [], []>} : vector<8x128xf32>, vector<128x128xf32>, vector<8x128xf32> -> vector<8x128xf32>
    %c0_15 = arith.constant 0 : index
    %c0_16 = arith.constant 0 : index
    %17 = vector.load %arg7[%c0_15, %c0_16] : memref<1x128xf32, #tpu.memory_space<vmem>>, vector<1x128xf32>
    %18 = vector.broadcast %17 : vector<1x128xf32> to vector<8x128xf32>
    %19 = arith.addf %16, %18 : vector<8x128xf32>
    %c0_17 = arith.constant 0 : index
    %c0_18 = arith.constant 0 : index
    %20 = vector.load %arg8[%c0_17, %c0_18] : memref<8x128xf32, #tpu.memory_space<vmem>>, vector<8x128xf32>
    tpu.vector_store %arg8[%c0_17, %c0_18], %19 {strides = array<i32>} : memref<8x128xf32, #tpu.memory_space<vmem>>, vector<8x128xf32>,
    return
  }
  func.func @transform_0(%arg0: i32) -> (i32, i32) {
    %c0_i32 = arith.constant 0 : i32
    %c0_i32_0 = arith.constant 0 : i32
    %c0_i32_1 = arith.constant 0 : i32
    return %c0_i32, %c0_i32_0 : i32, i32
  }
  func.func @transform_1(%arg0: i32) -> (i32, i32) {
    %c0_i32 = arith.constant 0 : i32
    %c0_i32_0 = arith.constant 0 : i32
    %c0_i32_1 = arith.constant 0 : i32
    return %c0_i32, %c0_i32_0 : i32, i32
  }
  func.func @transform_2(%arg0: i32) -> (i32, i32) {
    %c0_i32 = arith.constant 0 : i32
    %c0_i32_0 = arith.constant 0 : i32
    %c0_i32_1 = arith.constant 0 : i32
    return %c0_i32, %c0_i32_0 : i32, i32
  }
  func.func @transform_3(%arg0: i32) -> (i32, i32) {
    %c0_i32 = arith.constant 0 : i32
    %c0_i32_0 = arith.constant 0 : i32
    %c0_i32_1 = arith.constant 0 : i32
    return %c0_i32, %c0_i32_0 : i32, i32
  }
  func.func @transform_4(%arg0: i32) -> (i32, i32) {
    %c0_i32 = arith.constant 0 : i32
    %c0_i32_0 = arith.constant 0 : i32
    %c0_i32_1 = arith.constant 0 : i32
    return %c0_i32, %c0_i32_0 : i32, i32
  }
  func.func @transform_5(%arg0: i32) -> (i32, i32) {
    %c0_i32 = arith.constant 0 : i32
    %c0_i32_0 = arith.constant 0 : i32
    %c0_i32_1 = arith.constant 0 : i32
    return %c0_i32, %c0_i32_0 : i32, i32
  }
  func.func @transform_6(%arg0: i32) -> (i32, i32) {
    %c0_i32 = arith.constant 0 : i32
    %c0_i32_0 = arith.constant 0 : i32
    %c0_i32_1 = arith.constant 0 : i32
    return %c0_i32, %c0_i32_0 : i32, i32
  }
  func.func @transform_7(%arg0: i32) -> (i32, i32) {
    %c0_i32 = arith.constant 0 : i32
    %c0_i32_0 = arith.constant 0 : i32
    %c0_i32_1 = arith.constant 0 : i32
    return %c0_i32, %c0_i32_0 : i32, i32
  }
}

</mosaic_0001>

<llo_original>
// kernel: net_forward.3
$region0: #{net_forward.3}
  #allocation0 [shape = 'u32[]', space=smem, size = 0x4, offset = 0x4, fixed_abs, tag = 'smem constant byte address 0x4 - core index']
  #allocation1 [shape = 'u32[72,128]{1,0:T(1,128)}', space=vmem, size = 0x9000, scoped, tag = 'internal scratch']
  %s0 = inlined_call_operand.vmem [shape: f32[400,128], index: 0, kind: input, shape index: {}]
  %s1 = inlined_call_operand.vmem [shape: f32[400,128], index: 1, kind: input, shape index: {}]
  %s2 = inlined_call_operand.vmem [shape: f32[400,128], index: 2, kind: input, shape index: {}]
  %s3 = inlined_call_operand.vmem [shape: f32[400,128], index: 3, kind: input, shape index: {}]
  %s4 = inlined_call_operand.vmem [shape: f32[128,128], index: 4, kind: input, shape index: {}]
  %s5 = inlined_call_operand.vmem [shape: f32[1,128], index: 5, kind: input, shape index: {}]
  %s6 = inlined_call_operand.vmem [shape: f32[400,128], index: 6, kind: output, shape index: {}]
  %s7 = sld [smem:[#allocation0]]
  $region57: #{net_forward.3} parent=0
    _
  %s9 = ssub.s32 1, %s7
  %s10 = scalar_select 0, %s9, %s7
  loop: start=0, step=1, limit=4
  $region2: #{net_forward.3} parent=0 // loop_pre_header
    _
  $region3: #{net_forward.3} parent=0 // loop_header
    %s12 = sphi 0, %s16
    %p13 = scmp.ge.s32.totalorder %s12, 4
    %s22 = sphi 0, %s24
    %s25 = sphi 0, %s22
    %s26 = sphi 0, %s25
    %s42 = sphi 0, %s26
    %s48 = sphi 0, %s50
    %s51 = sphi 0, %s48
    %s52 = sphi 0, %s51
    %s68 = sphi 0, %s52
    %s74 = sphi 0, %s76
    %s77 = sphi 0, %s74
    %s78 = sphi 0, %s77
    %s94 = sphi 0, %s78
    %s100 = sphi 0, %s102
    %s103 = sphi 0, %s100
    %s104 = sphi 0, %s103
    %s120 = sphi 0, %s104
    %s124 = sphi 0, %s124
    %s126 = sphi 0, %s124
    %s127 = sphi 0, %s126
    %s141 = sphi 0, %s127
    %s145 = sphi 0, %s145
    %s147 = sphi 0, %s145
    %s148 = sphi 0, %s147
    %s162 = sphi 0, %s148
    %s168 = sphi 0, %s170
    %s171 = sphi 0, %s168
    %s172 = sphi 0, %s171
    %s188 = sphi 0, %s172
  $region4: #{net_forward.3} parent=0 // loop_header_branch
    %15 = sbr.rel (%p13) target = $region8
  $region5: #{net_forward.3} parent=0 // loop_body
    %s17 = ssub.s32 %s12, 1
    %s18 = ssub.s32 %s12, 2
    %s19 = sadd.s32 %s12, 1
    %s20 = ssub.s32 %s12, %s19
    %p21 = scmp.eq.s32.totalorder %s20, 0
    %s23 = sadd.s32 %s22, 1
    %s24 = scalar_select %p21, %s22, %s23
    %p27 = pneg %p21
    %p28 = scmp.eq.s32.totalorder %s12, 1
    %p29 = por %p27, %p28
    %p30 = scmp.ne.s32.totalorder %s22, %s25
    %p31 = scmp.eq.s32.totalorder %s12, 0
    %p32 = por %p30, %p31
    %p33 = scmp.ne.s32.totalorder %s22, %s25
    %p34 = scmp.eq.s32.totalorder %s17, 1
    %p35 = por %p33, %p34
    %p36 = scmp.ne.s32.totalorder %s25, %s26
    %p37 = scmp.eq.s32.totalorder %s17, 0
    %p38 = por %p36, %p37
    %p39 = scmp.ne.s32.totalorder %s25, %s26
    %p40 = scmp.eq.s32.totalorder %s18, 1
    %p41 = por %p39, %p40
    %p43 = scmp.ne.s32.totalorder %s26, %s42
    %p44 = scmp.eq.s32.totalorder %s18, 0
    %p45 = por %p43, %p44
    %s46 = ssub.s32 %s12, %s19
    %p47 = scmp.eq.s32.totalorder %s46, 0
    %s49 = sadd.s32 %s48, 1
    %s50 = scalar_select %p47, %s48, %s49
    %p53 = pneg %p47
    %p54 = scmp.eq.s32.totalorder %s12, 1
    %p55 = por %p53, %p54
    %p56 = scmp.ne.s32.totalorder %s48, %s51
    %p57 = scmp.eq.s32.totalorder %s12, 0
    %p58 = por %p56, %p57
    %p59 = scmp.ne.s32.totalorder %s48, %s51
    %p60 = scmp.eq.s32.totalorder %s17, 1
    %p61 = por %p59, %p60
    %p62 = scmp.ne.s32.totalorder %s51, %s52
    %p63 = scmp.eq.s32.totalorder %s17, 0
    %p64 = por %p62, %p63
    %p65 = scmp.ne.s32.totalorder %s51, %s52
    %p66 = scmp.eq.s32.totalorder %s18, 1
    %p67 = por %p65, %p66
    %p69 = scmp.ne.s32.totalorder %s52, %s68
    %p70 = scmp.eq.s32.totalorder %s18, 0
    %p71 = por %p69, %p70
    %s72 = ssub.s32 %s12, %s19
    %p73 = scmp.eq.s32.totalorder %s72, 0
    %s75 = sadd.s32 %s74, 1
    %s76 = scalar_select %p73, %s74, %s75
    %p79 = pneg %p73
    %p80 = scmp.eq.s32.totalorder %s12, 1
    %p81 = por %p79, %p80
    %p82 = scmp.ne.s32.totalorder %s74, %s77
    %p83 = scmp.eq.s32.totalorder %s12, 0
    %p84 = por %p82, %p83
    %p85 = scmp.ne.s32.totalorder %s74, %s77
    %p86 = scmp.eq.s32.totalorder %s17, 1
    %p87 = por %p85, %p86
    %p88 = scmp.ne.s32.totalorder %s77, %s78
    %p89 = scmp.eq.s32.totalorder %s17, 0
    %p90 = por %p88, %p89
    %p91 = scmp.ne.s32.totalorder %s77, %s78
    %p92 = scmp.eq.s32.totalorder %s18, 1
    %p93 = por %p91, %p92
    %p95 = scmp.ne.s32.totalorder %s78, %s94
    %p96 = scmp.eq.s32.totalorder %s18, 0
    %p97 = por %p95, %p96
    %s98 = ssub.s32 %s12, %s19
    %p99 = scmp.eq.s32.totalorder %s98, 0
    %s101 = sadd.s32 %s100, 1
    %s102 = scalar_select %p99, %s100, %s101
    %p105 = pneg %p99
    %p106 = scmp.eq.s32.totalorder %s12, 1
    %p107 = por %p105, %p106
    %p108 = scmp.ne.s32.totalorder %s100, %s103
    %p109 = scmp.eq.s32.totalorder %s12, 0
    %p110 = por %p108, %p109
    %p111 = scmp.ne.s32.totalorder %s100, %s103
    %p112 = scmp.eq.s32.totalorder %s17, 1
    %p113 = por %p111, %p112
    %p114 = scmp.ne.s32.totalorder %s103, %s104
    %p115 = scmp.eq.s32.totalorder %s17, 0
    %p116 = por %p114, %p115
    %p117 = scmp.ne.s32.totalorder %s103, %s104
    %p118 = scmp.eq.s32.totalorder %s18, 1
    %p119 = por %p117, %p118
    %p121 = scmp.ne.s32.totalorder %s104, %s120
    %p122 = scmp.eq.s32.totalorder %s18, 0
    %p123 = por %p121, %p122
    %s125 = sadd.s32 %s124, 1
    %p128 = scmp.eq.s32.totalorder %s12, 1
    %p129 = scmp.ne.s32.totalorder %s124, %s126
    %p130 = scmp.eq.s32.totalorder %s12, 0
    %p131 = por %p129, %p130
    %p132 = scmp.ne.s32.totalorder %s124, %s126
    %p133 = scmp.eq.s32.totalorder %s17, 1
    %p134 = por %p132, %p133
    %p135 = scmp.ne.s32.totalorder %s126, %s127
    %p136 = scmp.eq.s32.totalorder %s17, 0
    %p137 = por %p135, %p136
    %p138 = scmp.ne.s32.totalorder %s126, %s127
    %p139 = scmp.eq.s32.totalorder %s18, 1
    %p140 = por %p138, %p139
    %p142 = scmp.ne.s32.totalorder %s127, %s141
    %p143 = scmp.eq.s32.totalorder %s18, 0
    %p144 = por %p142, %p143
    %s146 = sadd.s32 %s145, 1
    %p149 = scmp.eq.s32.totalorder %s12, 1
    %p150 = scmp.ne.s32.totalorder %s145, %s147
    %p151 = scmp.eq.s32.totalorder %s12, 0
    %p152 = por %p150, %p151
    %p153 = scmp.ne.s32.totalorder %s145, %s147
    %p154 = scmp.eq.s32.totalorder %s17, 1
    %p155 = por %p153, %p154
    %p156 = scmp.ne.s32.totalorder %s147, %s148
    %p157 = scmp.eq.s32.totalorder %s17, 0
    %p158 = por %p156, %p157
    %p159 = scmp.ne.s32.totalorder %s147, %s148
    %p160 = scmp.eq.s32.totalorder %s18, 1
    %p161 = por %p159, %p160
    %p163 = scmp.ne.s32.totalorder %s148, %s162
    %p164 = scmp.eq.s32.totalorder %s18, 0
    %p165 = por %p163, %p164
    %s166 = ssub.s32 %s12, %s19
    %p167 = scmp.eq.s32.totalorder %s166, 0
    %s169 = sadd.s32 %s168, 1
    %s170 = scalar_select %p167, %s168, %s169
    %p173 = pneg %p167
    %p174 = scmp.eq.s32.totalorder %s12, 1
    %p175 = por %p173, %p174
    %p176 = scmp.ne.s32.totalorder %s168, %s171
    %p177 = scmp.eq.s32.totalorder %s12, 0
    %p178 = por %p176, %p177
    %p179 = scmp.ne.s32.totalorder %s168, %s171
    %p180 = scmp.eq.s32.totalorder %s17, 1
    %p181 = por %p179, %p180
    %p182 = scmp.ne.s32.totalorder %s171, %s172
    %p183 = scmp.eq.s32.totalorder %s17, 0
    %p184 = por %p182, %p183
    %p185 = scmp.ne.s32.totalorder %s171, %s172
    %p186 = scmp.eq.s32.totalorder %s18, 1
    %p187 = por %p185, %p186
    %p189 = scmp.ne.s32.totalorder %s172, %s188
    %p190 = scmp.eq.s32.totalorder %s18, 0
    %p191 = por %p189, %p190
    %p192 = scmp.le.s32.totalorder 1, %s12
    %p193 = scmp.lt.s32.totalorder %s12, 3
    %p194 = pnand %p192, %p193
    %p195 = pneg %p194
    // Predicated region
    $region9: #{net_forward.3} parent=5 // pred_check
      _
    $region10: #{net_forward.3} parent=5 // pred_check_branch
      %197 = sbr.rel (%p194) target = $region12
    $region11: #{net_forward.3} parent=5 // pred_region
      %s198 = ssub.s32 %s12, 1
      // Predicated region
      $region13: #{net_forward.3} parent=11 // pred_check
        %p199 = pneg %p137
      $region14: #{net_forward.3} parent=11 // pred_check_branch
        %201 = sbr.rel (%p199) target = $region16
      $region15: #{net_forward.3} parent=11 // pred_region
        _
      $region16: #{net_forward.3} parent=11 // pred_fallthru
        _
      // Predicated region
      $region17: #{net_forward.3} parent=11 // pred_check
        %p202 = pneg %p158
      $region18: #{net_forward.3} parent=11 // pred_check_branch
        %204 = sbr.rel (%p202) target = $region20
      $region19: #{net_forward.3} parent=11 // pred_region
        _
      $region20: #{net_forward.3} parent=11 // pred_fallthru
        _
    $region12: #{net_forward.3} parent=5 // pred_fallthru
      _
    %p205 = scmp.lt.s32.totalorder %s12, 2
    // Predicated region
    $region21: #{net_forward.3} parent=5 // pred_check
      %p206 = pneg %p205
    $region22: #{net_forward.3} parent=5 // pred_check_branch
      %208 = sbr.rel (%p206) target = $region24
    $region23: #{net_forward.3} parent=5 // pred_region
      // Predicated region
      $region25: #{net_forward.3} parent=23 // pred_check
        %p209 = pneg %p32
      $region26: #{net_forward.3} parent=23 // pred_check_branch
        %211 = sbr.rel (%p209) target = $region28
      $region27: #{net_forward.3} parent=23 // pred_region
        %s212 = smul.u32 25, %s12
        %p213 = scmp.lt.s32.totalorder %s212, 49
        %s214 = scalar_select %p213, %s212, 49
        %s215 = smul.addr %s214, 8
        %s216 = scalar_lea.vmem %s0, %s215
        %s217 = smul.u32 25, %s12
      $region28: #{net_forward.3} parent=23 // pred_fallthru
        _
      // Predicated region
      $region29: #{net_forward.3} parent=23 // pred_check
        %p218 = pneg %p58
      $region30: #{net_forward.3} parent=23 // pred_check_branch
        %220 = sbr.rel (%p218) target = $region32
      $region31: #{net_forward.3} parent=23 // pred_region
        %s221 = smul.u32 25, %s12
        %p222 = scmp.lt.s32.totalorder %s221, 49
        %s223 = scalar_select %p222, %s221, 49
        %s224 = smul.addr %s223, 8
        %s225 = scalar_lea.vmem %s1, %s224
        %s226 = smul.u32 25, %s12
      $region32: #{net_forward.3} parent=23 // pred_fallthru
        _
      // Predicated region
      $region33: #{net_forward.3} parent=23 // pred_check
        %p227 = pneg %p84
      $region34: #{net_forward.3} parent=23 // pred_check_branch
        %229 = sbr.rel (%p227) target = $region36
      $region35: #{net_forward.3} parent=23 // pred_region
        %s230 = smul.u32 25, %s12
        %p231 = scmp.lt.s32.totalorder %s230, 49
        %s232 = scalar_select %p231, %s230, 49
        %s233 = smul.addr %s232, 8
        %s234 = scalar_lea.vmem %s2, %s233
        %s235 = smul.u32 25, %s12
      $region36: #{net_forward.3} parent=23 // pred_fallthru
        _
      // Predicated region
      $region37: #{net_forward.3} parent=23 // pred_check
        %p236 = pneg %p110
      $region38: #{net_forward.3} parent=23 // pred_check_branch
        %238 = sbr.rel (%p236) target = $region40
      $region39: #{net_forward.3} parent=23 // pred_region
        %s239 = smul.u32 25, %s12
        %p240 = scmp.lt.s32.totalorder %s239, 49
        %s241 = scalar_select %p240, %s239, 49
        %s242 = smul.addr %s241, 8
        %s243 = scalar_lea.vmem %s3, %s242
        %s244 = smul.u32 25, %s12
      $region40: #{net_forward.3} parent=23 // pred_fallthru
        _
    $region24: #{net_forward.3} parent=5 // pred_fallthru
      _
    %p245 = scmp.le.s32.totalorder 1, %s12
    %p246 = scmp.lt.s32.totalorder %s12, 3
    %p247 = pnand %p245, %p246
    %p248 = pneg %p247
    // Predicated region
    $region41: #{net_forward.3} parent=5 // pred_check
      _
    $region42: #{net_forward.3} parent=5 // pred_check_branch
      %250 = sbr.rel (%p247) target = $region44
    $region43: #{net_forward.3} parent=5 // pred_region
      %s251 = ssub.s32 %s12, 1
      %s252 = smul.u32 25, %s17
      %p253 = scmp.lt.s32.totalorder %s252, 49
      %s254 = scalar_select %p253, %s252, 49
      %s255 = smul.addr %s254, 8
      %s256 = scalar_lea.vmem %s0, %s255
      %p257 = pneg %p38
      %p258 = pneg %p35
      %s259 = smul.u32 25, %s17
      %p260 = scmp.lt.s32.totalorder %s259, 49
      %s261 = scalar_select %p260, %s259, 49
      %s262 = smul.addr %s261, 8
      %s263 = scalar_lea.vmem %s1, %s262
      %p264 = pneg %p64
      %p265 = pneg %p61
      %s266 = smul.u32 25, %s17
      %p267 = scmp.lt.s32.totalorder %s266, 49
      %s268 = scalar_select %p267, %s266, 49
      %s269 = smul.addr %s268, 8
      %s270 = scalar_lea.vmem %s2, %s269
      %p271 = pneg %p90
      %p272 = pneg %p87
      %s273 = smul.u32 25, %s17
      %p274 = scmp.lt.s32.totalorder %s273, 49
      %s275 = scalar_select %p274, %s273, 49
      %s276 = smul.addr %s275, 8
      %s277 = scalar_lea.vmem %s3, %s276
      %p278 = pneg %p116
      %p279 = pneg %p113
      %p280 = pneg %p137
      %p281 = pneg %p134
      %p282 = pneg %p158
      %p283 = pneg %p155
      %p284 = pneg %p184
      %p285 = pneg %p181
      %s286 = smul.u32 25, %s17
      %p287 = scmp.lt.s32.totalorder %s286, 49
      %s288 = scalar_select %p287, %s286, 49
      %s289 = smul.addr %s288, 8
      %s290 = scalar_lea.vmem %s6, %s289
      %s291 = smul.u32 25, %s17
      %p292 = scmp.lt.s32.totalorder %s291, 49
      %s293 = scalar_select %p292, %s291, 49
      %s294 = smul.addr %s293, 8
      %s295 = scalar_lea.vmem %s0, %s294
      %s296 = smul.u32 25, %s17
      %s297 = smul.u32 25, %s17
      %p298 = scmp.lt.s32.totalorder %s297, 49
      %s299 = scalar_select %p298, %s297, 49
      %s300 = smul.addr %s299, 8
      %s301 = scalar_lea.vmem %s1, %s300
      %s302 = smul.u32 25, %s17
      %s303 = smul.u32 25, %s17
      %p304 = scmp.lt.s32.totalorder %s303, 49
      %s305 = scalar_select %p304, %s303, 49
      %s306 = smul.addr %s305, 8
      %s307 = scalar_lea.vmem %s2, %s306
      %s308 = smul.u32 25, %s17
      %s309 = smul.u32 25, %s17
      %p310 = scmp.lt.s32.totalorder %s309, 49
      %s311 = scalar_select %p310, %s309, 49
      %s312 = smul.addr %s311, 8
      %s313 = scalar_lea.vmem %s3, %s312
      %s314 = smul.u32 25, %s17
      %s315 = smul.u32 25, %s17
      %p316 = scmp.lt.s32.totalorder %s315, 49
      %s317 = scalar_select %p316, %s315, 49
      %s318 = smul.addr %s317, 8
      %s319 = scalar_lea.vmem %s6, %s318
      %s320 = smul.u32 25, %s17
      %v321 = vld [vmem:[%s4] sm:$0xff]
      %v322 = vld [vmem:[%s4 + $0x8] sm:$0xff]
      %v323 = vld [vmem:[%s4 + $0x10] sm:$0xff]
      %v324 = vld [vmem:[%s4 + $0x18] sm:$0xff]
      %v325 = vld [vmem:[%s4 + $0x20] sm:$0xff]
      %v326 = vld [vmem:[%s4 + $0x28] sm:$0xff]
      %v327 = vld [vmem:[%s4 + $0x30] sm:$0xff]
      %v328 = vld [vmem:[%s4 + $0x38] sm:$0xff]
      %v329 = vld [vmem:[%s4 + $0x40] sm:$0xff]
      %v330 = vld [vmem:[%s4 + $0x48] sm:$0xff]
      %v331 = vld [vmem:[%s4 + $0x50] sm:$0xff]
      %v332 = vld [vmem:[%s4 + $0x58] sm:$0xff]
      %v333 = vld [vmem:[%s4 + $0x60] sm:$0xff]
      %v334 = vld [vmem:[%s4 + $0x68] sm:$0xff]
      %v335 = vld [vmem:[%s4 + $0x70] sm:$0xff]
      %v336 = vld [vmem:[%s4 + $0x78] sm:$0xff]
      %v337 = vld [vmem:[%s5] sm:$0x1]
      %v338 = vld [vmem:[%s295] sm:$0xff]
      %v339 = vld [vmem:[%s295 + $0x8] sm:$0xff]
      %v340 = vld [vmem:[%s295 + $0x10] sm:$0xff]
      %v341 = vld [vmem:[%s295 + $0x18] sm:$0xff]
      %v342 = vld [vmem:[%s295 + $0x20] sm:$0xff]
      %v343 = vld [vmem:[%s295 + $0x28] sm:$0xff]
      %v344 = vld [vmem:[%s295 + $0x30] sm:$0xff]
      %v345 = vld [vmem:[%s295 + $0x38] sm:$0xff]
      %v346 = vld [vmem:[%s295 + $0x40] sm:$0xff]
      %v347 = vld [vmem:[%s295 + $0x48] sm:$0xff]
      %v348 = vld [vmem:[%s295 + $0x50] sm:$0xff]
      %v349 = vld [vmem:[%s295 + $0x58] sm:$0xff]
      %v350 = vld [vmem:[%s295 + $0x60] sm:$0xff]
      %v351 = vld [vmem:[%s295 + $0x68] sm:$0xff]
      %v352 = vld [vmem:[%s295 + $0x70] sm:$0xff]
      %v353 = vld [vmem:[%s295 + $0x78] sm:$0xff]
      %v354 = vld [vmem:[%s295 + $0x80] sm:$0xff]
      %v355 = vld [vmem:[%s295 + $0x88] sm:$0xff]
      %v356 = vld [vmem:[%s295 + $0x90] sm:$0xff]
      %v357 = vld [vmem:[%s295 + $0x98] sm:$0xff]
      %v358 = vld [vmem:[%s295 + $0xa0] sm:$0xff]
      %v359 = vld [vmem:[%s295 + $0xa8] sm:$0xff]
      %v360 = vld [vmem:[%s295 + $0xb0] sm:$0xff]
      %v361 = vld [vmem:[%s295 + $0xb8] sm:$0xff]
      %v362 = vld [vmem:[%s295 + $0xc0] sm:$0xff]
      %v364 = vperm.slane %v337, 0
      %366 = vmatpush.msra.mxu0 %v336
      %367 = vmatpush.msra.mxu0 %v335
      %368 = vmatpush.msra.mxu0 %v334
      %369 = vmatpush.msra.mxu0 %v333
      %370 = vmatpush.msra.mxu0 %v332
      %371 = vmatpush.msra.mxu0 %v331
      %372 = vmatpush.msra.mxu0 %v330
      %373 = vmatpush.msra.mxu0 %v329
      %374 = vmatpush.msra.mxu0 %v328
      %375 = vmatpush.msra.mxu0 %v327
      %376 = vmatpush.msra.mxu0 %v326
      %377 = vmatpush.msra.mxu0 %v325
      %378 = vmatpush.msra.mxu0 %v324
      %379 = vmatpush.msra.mxu0 %v323
      %380 = vmatpush.msra.mxu0 %v322
      %381 = vmatpush.msra.mxu0 %v321
      %382 = vmatmul.f32.gmra.mxu0 %v338
      %v383 = vpop.f32.mrf.mxu0
      %v384 = vadd.f32 %v364, %v383
      %385 = vmatmul.f32.gmra.mxu0 %v339
      %v386 = vpop.f32.mrf.mxu0
      %v387 = vadd.f32 %v364, %v386
      %388 = vmatmul.f32.gmra.mxu0 %v340
      %v389 = vpop.f32.mrf.mxu0
      %v390 = vadd.f32 %v364, %v389
      %391 = vmatmul.f32.gmra.mxu0 %v341
      %v392 = vpop.f32.mrf.mxu0
      %v393 = vadd.f32 %v364, %v392
      %394 = vmatmul.f32.gmra.mxu0 %v342
      %v395 = vpop.f32.mrf.mxu0
      %v396 = vadd.f32 %v364, %v395
      %397 = vmatmul.f32.gmra.mxu0 %v343
      %v398 = vpop.f32.mrf.mxu0
      %v399 = vadd.f32 %v364, %v398
      %400 = vmatmul.f32.gmra.mxu0 %v344
      %v401 = vpop.f32.mrf.mxu0
      %v402 = vadd.f32 %v364, %v401
      %403 = vmatmul.f32.gmra.mxu0 %v345
      %v404 = vpop.f32.mrf.mxu0
      %v405 = vadd.f32 %v364, %v404
      %406 = vmatmul.f32.gmra.mxu0 %v346
      %v407 = vpop.f32.mrf.mxu0
      %v408 = vadd.f32 %v364, %v407
      %409 = vmatmul.f32.gmra.mxu0 %v347
      %v410 = vpop.f32.mrf.mxu0
      %v411 = vadd.f32 %v364, %v410
      %412 = vmatmul.f32.gmra.mxu0 %v348
      %v413 = vpop.f32.mrf.mxu0
      %v414 = vadd.f32 %v364, %v413
      %415 = vmatmul.f32.gmra.mxu0 %v349
      %v416 = vpop.f32.mrf.mxu0
      %v417 = vadd.f32 %v364, %v416
      %418 = vmatmul.f32.gmra.mxu0 %v350
      %v419 = vpop.f32.mrf.mxu0
      %v420 = vadd.f32 %v364, %v419
      %421 = vmatmul.f32.gmra.mxu0 %v351
      %v422 = vpop.f32.mrf.mxu0
      %v423 = vadd.f32 %v364, %v422
      %424 = vmatmul.f32.gmra.mxu0 %v352
      %v425 = vpop.f32.mrf.mxu0
      %v426 = vadd.f32 %v364, %v425
      %427 = vmatmul.f32.gmra.mxu0 %v353
      %v428 = vpop.f32.mrf.mxu0
      %v429 = vadd.f32 %v364, %v428
      %430 = vmatmul.f32.gmra.mxu0 %v354
      %v431 = vpop.f32.mrf.mxu0
      %v432 = vadd.f32 %v364, %v431
      %433 = vmatmul.f32.gmra.mxu0 %v355
      %v434 = vpop.f32.mrf.mxu0
      %v435 = vadd.f32 %v364, %v434
      %436 = vmatmul.f32.gmra.mxu0 %v356
      %v437 = vpop.f32.mrf.mxu0
      %v438 = vadd.f32 %v364, %v437
      %439 = vmatmul.f32.gmra.mxu0 %v357
      %v440 = vpop.f32.mrf.mxu0
      %v441 = vadd.f32 %v364, %v440
      %442 = vmatmul.f32.gmra.mxu0 %v358
      %v443 = vpop.f32.mrf.mxu0
      %v444 = vadd.f32 %v364, %v443
      %445 = vmatmul.f32.gmra.mxu0 %v359
      %v446 = vpop.f32.mrf.mxu0
      %v447 = vadd.f32 %v364, %v446
      %448 = vmatmul.f32.gmra.mxu0 %v360
      %v449 = vpop.f32.mrf.mxu0
      %v450 = vadd.f32 %v364, %v449
      %451 = vmatmul.f32.gmra.mxu0 %v361
      %v452 = vpop.f32.mrf.mxu0
      %v453 = vadd.f32 %v364, %v452
      %454 = vmatmul.f32.gmra.mxu0 %v362
      %v455 = vpop.f32.mrf.mxu0
      %v456 = vadd.f32 %v364, %v455
      %457 = vdwg.mxu0
      %v458 = vmax.f32 %v384, 0.0
      %v459 = vmax.f32 %v387, 0.0
      %v460 = vmax.f32 %v390, 0.0
      %v461 = vmax.f32 %v393, 0.0
      %v462 = vmax.f32 %v396, 0.0
      %v463 = vmax.f32 %v399, 0.0
      %v464 = vmax.f32 %v402, 0.0
      %v465 = vmax.f32 %v405, 0.0
      %v466 = vmax.f32 %v408, 0.0
      %v467 = vmax.f32 %v411, 0.0
      %v468 = vmax.f32 %v414, 0.0
      %v469 = vmax.f32 %v417, 0.0
      %v470 = vmax.f32 %v420, 0.0
      %v471 = vmax.f32 %v423, 0.0
      %v472 = vmax.f32 %v426, 0.0
      %v473 = vmax.f32 %v429, 0.0
      %v474 = vmax.f32 %v432, 0.0
      %v475 = vmax.f32 %v435, 0.0
      %v476 = vmax.f32 %v438, 0.0
      %v477 = vmax.f32 %v441, 0.0
      %v478 = vmax.f32 %v444, 0.0
      %v479 = vmax.f32 %v447, 0.0
      %v480 = vmax.f32 %v450, 0.0
      %v481 = vmax.f32 %v453, 0.0
      %v482 = vmax.f32 %v456, 0.0
      %v483 = vld [vmem:[%s301] sm:$0xff]
      %v484 = vld [vmem:[%s301 + $0x8] sm:$0xff]
      %v485 = vld [vmem:[%s301 + $0x10] sm:$0xff]
      %v486 = vld [vmem:[%s301 + $0x18] sm:$0xff]
      %v487 = vld [vmem:[%s301 + $0x20] sm:$0xff]
      %v488 = vld [vmem:[%s301 + $0x28] sm:$0xff]
      %v489 = vld [vmem:[%s301 + $0x30] sm:$0xff]
      %v490 = vld [vmem:[%s301 + $0x38] sm:$0xff]
      %v491 = vld [vmem:[%s301 + $0x40] sm:$0xff]
      %v492 = vld [vmem:[%s301 + $0x48] sm:$0xff]
      %v493 = vld [vmem:[%s301 + $0x50] sm:$0xff]
      %v494 = vld [vmem:[%s301 + $0x58] sm:$0xff]
      %v495 = vld [vmem:[%s301 + $0x60] sm:$0xff]
      %v496 = vld [vmem:[%s301 + $0x68] sm:$0xff]
      %v497 = vld [vmem:[%s301 + $0x70] sm:$0xff]
      %v498 = vld [vmem:[%s301 + $0x78] sm:$0xff]
      %v499 = vld [vmem:[%s301 + $0x80] sm:$0xff]
      %v500 = vld [vmem:[%s301 + $0x88] sm:$0xff]
      %v501 = vld [vmem:[%s301 + $0x90] sm:$0xff]
      %v502 = vld [vmem:[%s301 + $0x98] sm:$0xff]
      %v503 = vld [vmem:[%s301 + $0xa0] sm:$0xff]
      %v504 = vld [vmem:[%s301 + $0xa8] sm:$0xff]
      %v505 = vld [vmem:[%s301 + $0xb0] sm:$0xff]
      %v506 = vld [vmem:[%s301 + $0xb8] sm:$0xff]
      %v507 = vld [vmem:[%s301 + $0xc0] sm:$0xff]
      %508 = vmatpush.msra.mxu0 %v336
      %509 = vmatpush.msra.mxu0 %v335
      %510 = vmatpush.msra.mxu0 %v334
      %511 = vmatpush.msra.mxu0 %v333
      %512 = vmatpush.msra.mxu0 %v332
      %513 = vmatpush.msra.mxu0 %v331
      %514 = vmatpush.msra.mxu0 %v330
      %515 = vmatpush.msra.mxu0 %v329
      %516 = vmatpush.msra.mxu0 %v328
      %517 = vmatpush.msra.mxu0 %v327
      %518 = vmatpush.msra.mxu0 %v326
      %519 = vmatpush.msra.mxu0 %v325
      %520 = vmatpush.msra.mxu0 %v324
      %521 = vmatpush.msra.mxu0 %v323
      %522 = vmatpush.msra.mxu0 %v322
      %523 = vmatpush.msra.mxu0 %v321
      %524 = vmatmul.f32.gmra.mxu0 %v483
      %v525 = vpop.f32.mrf.mxu0
      %v526 = vadd.f32 %v364, %v525
      %527 = vmatmul.f32.gmra.mxu0 %v484
      %v528 = vpop.f32.mrf.mxu0
      %v529 = vadd.f32 %v364, %v528
      %530 = vmatmul.f32.gmra.mxu0 %v485
      %v531 = vpop.f32.mrf.mxu0
      %v532 = vadd.f32 %v364, %v531
      %533 = vmatmul.f32.gmra.mxu0 %v486
      %v534 = vpop.f32.mrf.mxu0
      %v535 = vadd.f32 %v364, %v534
      %536 = vmatmul.f32.gmra.mxu0 %v487
      %v537 = vpop.f32.mrf.mxu0
      %v538 = vadd.f32 %v364, %v537
      %539 = vmatmul.f32.gmra.mxu0 %v488
      %v540 = vpop.f32.mrf.mxu0
      %v541 = vadd.f32 %v364, %v540
      %542 = vmatmul.f32.gmra.mxu0 %v489
      %v543 = vpop.f32.mrf.mxu0
      %v544 = vadd.f32 %v364, %v543
      %545 = vmatmul.f32.gmra.mxu0 %v490
      %v546 = vpop.f32.mrf.mxu0
      %v547 = vadd.f32 %v364, %v546
      %548 = vmatmul.f32.gmra.mxu0 %v491
      %v549 = vpop.f32.mrf.mxu0
      %v550 = vadd.f32 %v364, %v549
      %551 = vmatmul.f32.gmra.mxu0 %v492
      %v552 = vpop.f32.mrf.mxu0
      %v553 = vadd.f32 %v364, %v552
      %554 = vmatmul.f32.gmra.mxu0 %v493
      %v555 = vpop.f32.mrf.mxu0
      %v556 = vadd.f32 %v364, %v555
      %557 = vmatmul.f32.gmra.mxu0 %v494
      %v558 = vpop.f32.mrf.mxu0
      %v559 = vadd.f32 %v364, %v558
      %560 = vmatmul.f32.gmra.mxu0 %v495
      %v561 = vpop.f32.mrf.mxu0
      %v562 = vadd.f32 %v364, %v561
      %563 = vmatmul.f32.gmra.mxu0 %v496
      %v564 = vpop.f32.mrf.mxu0
      %v565 = vadd.f32 %v364, %v564
      %566 = vmatmul.f32.gmra.mxu0 %v497
      %v567 = vpop.f32.mrf.mxu0
      %v568 = vadd.f32 %v364, %v567
      %569 = vmatmul.f32.gmra.mxu0 %v498
      %v570 = vpop.f32.mrf.mxu0
      %v571 = vadd.f32 %v364, %v570
      %572 = vmatmul.f32.gmra.mxu0 %v499
      %v573 = vpop.f32.mrf.mxu0
      %v574 = vadd.f32 %v364, %v573
      %575 = vmatmul.f32.gmra.mxu0 %v500
      %v576 = vpop.f32.mrf.mxu0
      %v577 = vadd.f32 %v364, %v576
      %578 = vmatmul.f32.gmra.mxu0 %v501
      %v579 = vpop.f32.mrf.mxu0
      %v580 = vadd.f32 %v364, %v579
      %581 = vmatmul.f32.gmra.mxu0 %v502
      %v582 = vpop.f32.mrf.mxu0
      %v583 = vadd.f32 %v364, %v582
      %584 = vmatmul.f32.gmra.mxu0 %v503
      %v585 = vpop.f32.mrf.mxu0
      %v586 = vadd.f32 %v364, %v585
      %587 = vmatmul.f32.gmra.mxu0 %v504
      %v588 = vpop.f32.mrf.mxu0
      %v589 = vadd.f32 %v364, %v588
      %590 = vmatmul.f32.gmra.mxu0 %v505
      %v591 = vpop.f32.mrf.mxu0
      %v592 = vadd.f32 %v364, %v591
      %593 = vmatmul.f32.gmra.mxu0 %v506
      %v594 = vpop.f32.mrf.mxu0
      %v595 = vadd.f32 %v364, %v594
      %596 = vmatmul.f32.gmra.mxu0 %v507
      %v597 = vpop.f32.mrf.mxu0
      %v598 = vadd.f32 %v364, %v597
      %599 = vdwg.mxu0
      %v600 = vmax.f32 %v526, 0.0
      %v601 = vmax.f32 %v529, 0.0
      %v602 = vmax.f32 %v532, 0.0
      %v603 = vmax.f32 %v535, 0.0
      %v604 = vmax.f32 %v538, 0.0
      %v605 = vmax.f32 %v541, 0.0
      %v606 = vmax.f32 %v544, 0.0
      %v607 = vmax.f32 %v547, 0.0
      %v608 = vmax.f32 %v550, 0.0
      %v609 = vmax.f32 %v553, 0.0
      %v610 = vmax.f32 %v556, 0.0
      %v611 = vmax.f32 %v559, 0.0
      %v612 = vmax.f32 %v562, 0.0
      %v613 = vmax.f32 %v565, 0.0
      %v614 = vmax.f32 %v568, 0.0
      %v615 = vmax.f32 %v571, 0.0
      %v616 = vmax.f32 %v574, 0.0
      %v617 = vmax.f32 %v577, 0.0
      %v618 = vmax.f32 %v580, 0.0
      %v619 = vmax.f32 %v583, 0.0
      %v620 = vmax.f32 %v586, 0.0
      %v621 = vmax.f32 %v589, 0.0
      %v622 = vmax.f32 %v592, 0.0
      %v623 = vmax.f32 %v595, 0.0
      %v624 = vmax.f32 %v598, 0.0
      %v625 = vmax.f32 %v458, %v600
      %v626 = vmax.f32 %v459, %v601
      %v627 = vmax.f32 %v460, %v602
      %v628 = vmax.f32 %v461, %v603
      %v629 = vmax.f32 %v462, %v604
      %v630 = vmax.f32 %v463, %v605
      %v631 = vmax.f32 %v464, %v606
      %v632 = vmax.f32 %v465, %v607
      %v633 = vmax.f32 %v466, %v608
      %v634 = vmax.f32 %v467, %v609
      %v635 = vmax.f32 %v468, %v610
      %v636 = vmax.f32 %v469, %v611
      %v637 = vmax.f32 %v470, %v612
      %v638 = vmax.f32 %v471, %v613
      %v639 = vmax.f32 %v472, %v614
      %v640 = vmax.f32 %v473, %v615
      %v641 = vmax.f32 %v474, %v616
      %v642 = vmax.f32 %v475, %v617
      %v643 = vmax.f32 %v476, %v618
      %v644 = vmax.f32 %v477, %v619
      %v645 = vmax.f32 %v478, %v620
      %v646 = vmax.f32 %v479, %v621
      %v647 = vmax.f32 %v480, %v622
      %v648 = vmax.f32 %v481, %v623
      %v649 = vmax.f32 %v482, %v624
      %v650 = vld [vmem:[%s307] sm:$0xff]
      %v651 = vld [vmem:[%s307 + $0x8] sm:$0xff]
      %v652 = vld [vmem:[%s307 + $0x10] sm:$0xff]
      %v653 = vld [vmem:[%s307 + $0x18] sm:$0xff]
      %v654 = vld [vmem:[%s307 + $0x20] sm:$0xff]
      %v655 = vld [vmem:[%s307 + $0x28] sm:$0xff]
      %v656 = vld [vmem:[%s307 + $0x30] sm:$0xff]
      %v657 = vld [vmem:[%s307 + $0x38] sm:$0xff]
      %v658 = vld [vmem:[%s307 + $0x40] sm:$0xff]
      %v659 = vld [vmem:[%s307 + $0x48] sm:$0xff]
      %v660 = vld [vmem:[%s307 + $0x50] sm:$0xff]
      %v661 = vld [vmem:[%s307 + $0x58] sm:$0xff]
      %v662 = vld [vmem:[%s307 + $0x60] sm:$0xff]
      %v663 = vld [vmem:[%s307 + $0x68] sm:$0xff]
      %v664 = vld [vmem:[%s307 + $0x70] sm:$0xff]
      %v665 = vld [vmem:[%s307 + $0x78] sm:$0xff]
      %v666 = vld [vmem:[%s307 + $0x80] sm:$0xff]
      %v667 = vld [vmem:[%s307 + $0x88] sm:$0xff]
      %v668 = vld [vmem:[%s307 + $0x90] sm:$0xff]
      %v669 = vld [vmem:[%s307 + $0x98] sm:$0xff]
      %v670 = vld [vmem:[%s307 + $0xa0] sm:$0xff]
      %v671 = vld [vmem:[%s307 + $0xa8] sm:$0xff]
      %v672 = vld [vmem:[%s307 + $0xb0] sm:$0xff]
      %v673 = vld [vmem:[%s307 + $0xb8] sm:$0xff]
      %v674 = vld [vmem:[%s307 + $0xc0] sm:$0xff]
      %675 = vmatpush.msra.mxu0 %v336
      %676 = vmatpush.msra.mxu0 %v335
      %677 = vmatpush.msra.mxu0 %v334
      %678 = vmatpush.msra.mxu0 %v333
      %679 = vmatpush.msra.mxu0 %v332
      %680 = vmatpush.msra.mxu0 %v331
      %681 = vmatpush.msra.mxu0 %v330
      %682 = vmatpush.msra.mxu0 %v329
      %683 = vmatpush.msra.mxu0 %v328
      %684 = vmatpush.msra.mxu0 %v327
      %685 = vmatpush.msra.mxu0 %v326
      %686 = vmatpush.msra.mxu0 %v325
      %687 = vmatpush.msra.mxu0 %v324
      %688 = vmatpush.msra.mxu0 %v323
      %689 = vmatpush.msra.mxu0 %v322
      %690 = vmatpush.msra.mxu0 %v321
      %691 = vmatmul.f32.gmra.mxu0 %v650
      %v692 = vpop.f32.mrf.mxu0
      %v693 = vadd.f32 %v364, %v692
      %694 = vmatmul.f32.gmra.mxu0 %v651
      %v695 = vpop.f32.mrf.mxu0
      %v696 = vadd.f32 %v364, %v695
      %697 = vmatmul.f32.gmra.mxu0 %v652
      %v698 = vpop.f32.mrf.mxu0
      %v699 = vadd.f32 %v364, %v698
      %700 = vmatmul.f32.gmra.mxu0 %v653
      %v701 = vpop.f32.mrf.mxu0
      %v702 = vadd.f32 %v364, %v701
      %703 = vmatmul.f32.gmra.mxu0 %v654
      %v704 = vpop.f32.mrf.mxu0
      %v705 = vadd.f32 %v364, %v704
      %706 = vmatmul.f32.gmra.mxu0 %v655
      %v707 = vpop.f32.mrf.mxu0
      %v708 = vadd.f32 %v364, %v707
      %709 = vmatmul.f32.gmra.mxu0 %v656
      %v710 = vpop.f32.mrf.mxu0
      %v711 = vadd.f32 %v364, %v710
      %712 = vmatmul.f32.gmra.mxu0 %v657
      %v713 = vpop.f32.mrf.mxu0
      %v714 = vadd.f32 %v364, %v713
      %715 = vmatmul.f32.gmra.mxu0 %v658
      %v716 = vpop.f32.mrf.mxu0
      %v717 = vadd.f32 %v364, %v716
      %718 = vmatmul.f32.gmra.mxu0 %v659
      %v719 = vpop.f32.mrf.mxu0
      %v720 = vadd.f32 %v364, %v719
      %721 = vmatmul.f32.gmra.mxu0 %v660
      %v722 = vpop.f32.mrf.mxu0
      %v723 = vadd.f32 %v364, %v722
      %724 = vmatmul.f32.gmra.mxu0 %v661
      %v725 = vpop.f32.mrf.mxu0
      %v726 = vadd.f32 %v364, %v725
      %727 = vmatmul.f32.gmra.mxu0 %v662
      %v728 = vpop.f32.mrf.mxu0
      %v729 = vadd.f32 %v364, %v728
      %730 = vmatmul.f32.gmra.mxu0 %v663
      %v731 = vpop.f32.mrf.mxu0
      %v732 = vadd.f32 %v364, %v731
      %733 = vmatmul.f32.gmra.mxu0 %v664
      %v734 = vpop.f32.mrf.mxu0
      %v735 = vadd.f32 %v364, %v734
      %736 = vmatmul.f32.gmra.mxu0 %v665
      %v737 = vpop.f32.mrf.mxu0
      %v738 = vadd.f32 %v364, %v737
      %739 = vmatmul.f32.gmra.mxu0 %v666
      %v740 = vpop.f32.mrf.mxu0
      %v741 = vadd.f32 %v364, %v740
      %742 = vmatmul.f32.gmra.mxu0 %v667
      %v743 = vpop.f32.mrf.mxu0
      %v744 = vadd.f32 %v364, %v743
      %745 = vmatmul.f32.gmra.mxu0 %v668
      %v746 = vpop.f32.mrf.mxu0
      %v747 = vadd.f32 %v364, %v746
      %748 = vmatmul.f32.gmra.mxu0 %v669
      %v749 = vpop.f32.mrf.mxu0
      %v750 = vadd.f32 %v364, %v749
      %751 = vmatmul.f32.gmra.mxu0 %v670
      %v752 = vpop.f32.mrf.mxu0
      %v753 = vadd.f32 %v364, %v752
      %754 = vmatmul.f32.gmra.mxu0 %v671
      %v755 = vpop.f32.mrf.mxu0
      %v756 = vadd.f32 %v364, %v755
      %757 = vmatmul.f32.gmra.mxu0 %v672
      %v758 = vpop.f32.mrf.mxu0
      %v759 = vadd.f32 %v364, %v758
      %760 = vmatmul.f32.gmra.mxu0 %v673
      %v761 = vpop.f32.mrf.mxu0
      %v762 = vadd.f32 %v364, %v761
      %763 = vmatmul.f32.gmra.mxu0 %v674
      %v764 = vpop.f32.mrf.mxu0
      %v765 = vadd.f32 %v364, %v764
      %766 = vdwg.mxu0
      %v767 = vmax.f32 %v693, 0.0
      %v768 = vmax.f32 %v696, 0.0
      %v769 = vmax.f32 %v699, 0.0
      %v770 = vmax.f32 %v702, 0.0
      %v771 = vmax.f32 %v705, 0.0
      %v772 = vmax.f32 %v708, 0.0
      %v773 = vmax.f32 %v711, 0.0
      %v774 = vmax.f32 %v714, 0.0
      %v775 = vmax.f32 %v717, 0.0
      %v776 = vmax.f32 %v720, 0.0
      %v777 = vmax.f32 %v723, 0.0
      %v778 = vmax.f32 %v726, 0.0
      %v779 = vmax.f32 %v729, 0.0
      %v780 = vmax.f32 %v732, 0.0
      %v781 = vmax.f32 %v735, 0.0
      %v782 = vmax.f32 %v738, 0.0
      %v783 = vmax.f32 %v741, 0.0
      %v784 = vmax.f32 %v744, 0.0
      %v785 = vmax.f32 %v747, 0.0
      %v786 = vmax.f32 %v750, 0.0
      %v787 = vmax.f32 %v753, 0.0
      %v788 = vmax.f32 %v756, 0.0
      %v789 = vmax.f32 %v759, 0.0
      %v790 = vmax.f32 %v762, 0.0
      %v791 = vmax.f32 %v765, 0.0
      %v792 = vld [vmem:[%s313] sm:$0xff]
      %v793 = vld [vmem:[%s313 + $0x8] sm:$0xff]
      %v794 = vld [vmem:[%s313 + $0x10] sm:$0xff]
      %v795 = vld [vmem:[%s313 + $0x18] sm:$0xff]
      %v796 = vld [vmem:[%s313 + $0x20] sm:$0xff]
      %v797 = vld [vmem:[%s313 + $0x28] sm:$0xff]
      %v798 = vld [vmem:[%s313 + $0x30] sm:$0xff]
      %v799 = vld [vmem:[%s313 + $0x38] sm:$0xff]
      %v800 = vld [vmem:[%s313 + $0x40] sm:$0xff]
      %v801 = vld [vmem:[%s313 + $0x48] sm:$0xff]
      %v802 = vld [vmem:[%s313 + $0x50] sm:$0xff]
      %v803 = vld [vmem:[%s313 + $0x58] sm:$0xff]
      %v804 = vld [vmem:[%s313 + $0x60] sm:$0xff]
      %v805 = vld [vmem:[%s313 + $0x68] sm:$0xff]
      %v806 = vld [vmem:[%s313 + $0x70] sm:$0xff]
      %v807 = vld [vmem:[%s313 + $0x78] sm:$0xff]
      %v808 = vld [vmem:[%s313 + $0x80] sm:$0xff]
      %v809 = vld [vmem:[%s313 + $0x88] sm:$0xff]
      %v810 = vld [vmem:[%s313 + $0x90] sm:$0xff]
      %v811 = vld [vmem:[%s313 + $0x98] sm:$0xff]
      %v812 = vld [vmem:[%s313 + $0xa0] sm:$0xff]
      %v813 = vld [vmem:[%s313 + $0xa8] sm:$0xff]
      %v814 = vld [vmem:[%s313 + $0xb0] sm:$0xff]
      %v815 = vld [vmem:[%s313 + $0xb8] sm:$0xff]
      %v816 = vld [vmem:[%s313 + $0xc0] sm:$0xff]
      %817 = vmatpush.msra.mxu0 %v336
      %818 = vmatpush.msra.mxu0 %v335
      %819 = vmatpush.msra.mxu0 %v334
      %820 = vmatpush.msra.mxu0 %v333
      %821 = vmatpush.msra.mxu0 %v332
      %822 = vmatpush.msra.mxu0 %v331
      %823 = vmatpush.msra.mxu0 %v330
      %824 = vmatpush.msra.mxu0 %v329
      %825 = vmatpush.msra.mxu0 %v328
      %826 = vmatpush.msra.mxu0 %v327
      %827 = vmatpush.msra.mxu0 %v326
      %828 = vmatpush.msra.mxu0 %v325
      %829 = vmatpush.msra.mxu0 %v324
      %830 = vmatpush.msra.mxu0 %v323
      %831 = vmatpush.msra.mxu0 %v322
      %832 = vmatpush.msra.mxu0 %v321
      %833 = vmatmul.f32.gmra.mxu0 %v792
      %v834 = vpop.f32.mrf.mxu0
      %v835 = vadd.f32 %v364, %v834
      %836 = vmatmul.f32.gmra.mxu0 %v793
      %v837 = vpop.f32.mrf.mxu0
      %v838 = vadd.f32 %v364, %v837
      %839 = vmatmul.f32.gmra.mxu0 %v794
      %v840 = vpop.f32.mrf.mxu0
      %v841 = vadd.f32 %v364, %v840
      %842 = vmatmul.f32.gmra.mxu0 %v795
      %v843 = vpop.f32.mrf.mxu0
      %v844 = vadd.f32 %v364, %v843
      %845 = vmatmul.f32.gmra.mxu0 %v796
      %v846 = vpop.f32.mrf.mxu0
      %v847 = vadd.f32 %v364, %v846
      %848 = vmatmul.f32.gmra.mxu0 %v797
      %v849 = vpop.f32.mrf.mxu0
      %v850 = vadd.f32 %v364, %v849
      %851 = vmatmul.f32.gmra.mxu0 %v798
      %v852 = vpop.f32.mrf.mxu0
      %v853 = vadd.f32 %v364, %v852
      %854 = vmatmul.f32.gmra.mxu0 %v799
      %v855 = vpop.f32.mrf.mxu0
      %v856 = vadd.f32 %v364, %v855
      %857 = vmatmul.f32.gmra.mxu0 %v800
      %v858 = vpop.f32.mrf.mxu0
      %v859 = vadd.f32 %v364, %v858
      %860 = vmatmul.f32.gmra.mxu0 %v801
      %v861 = vpop.f32.mrf.mxu0
      %v862 = vadd.f32 %v364, %v861
      %863 = vmatmul.f32.gmra.mxu0 %v802
      %v864 = vpop.f32.mrf.mxu0
      %v865 = vadd.f32 %v364, %v864
      %866 = vmatmul.f32.gmra.mxu0 %v803
      %v867 = vpop.f32.mrf.mxu0
      %v868 = vadd.f32 %v364, %v867
      %869 = vmatmul.f32.gmra.mxu0 %v804
      %v870 = vpop.f32.mrf.mxu0
      %v871 = vadd.f32 %v364, %v870
      %872 = vmatmul.f32.gmra.mxu0 %v805
      %v873 = vpop.f32.mrf.mxu0
      %v874 = vadd.f32 %v364, %v873
      %875 = vmatmul.f32.gmra.mxu0 %v806
      %v876 = vpop.f32.mrf.mxu0
      %v877 = vadd.f32 %v364, %v876
      %878 = vmatmul.f32.gmra.mxu0 %v807
      %v879 = vpop.f32.mrf.mxu0
      %v880 = vadd.f32 %v364, %v879
      %881 = vmatmul.f32.gmra.mxu0 %v808
      %v882 = vpop.f32.mrf.mxu0
      %v883 = vadd.f32 %v364, %v882
      %884 = vmatmul.f32.gmra.mxu0 %v809
      %v885 = vpop.f32.mrf.mxu0
      %v886 = vadd.f32 %v364, %v885
      %887 = vmatmul.f32.gmra.mxu0 %v810
      %v888 = vpop.f32.mrf.mxu0
      %v889 = vadd.f32 %v364, %v888
      %890 = vmatmul.f32.gmra.mxu0 %v811
      %v891 = vpop.f32.mrf.mxu0
      %v892 = vadd.f32 %v364, %v891
      %893 = vmatmul.f32.gmra.mxu0 %v812
      %v894 = vpop.f32.mrf.mxu0
      %v895 = vadd.f32 %v364, %v894
      %896 = vmatmul.f32.gmra.mxu0 %v813
      %v897 = vpop.f32.mrf.mxu0
      %v898 = vadd.f32 %v364, %v897
      %899 = vmatmul.f32.gmra.mxu0 %v814
      %v900 = vpop.f32.mrf.mxu0
      %v901 = vadd.f32 %v364, %v900
      %902 = vmatmul.f32.gmra.mxu0 %v815
      %v903 = vpop.f32.mrf.mxu0
      %v904 = vadd.f32 %v364, %v903
      %905 = vmatmul.f32.gmra.mxu0 %v816
      %v906 = vpop.f32.mrf.mxu0
      %v907 = vadd.f32 %v364, %v906
      %908 = vdwg.mxu0
      %v909 = vmax.f32 %v835, 0.0
      %v910 = vmax.f32 %v838, 0.0
      %v911 = vmax.f32 %v841, 0.0
      %v912 = vmax.f32 %v844, 0.0
      %v913 = vmax.f32 %v847, 0.0
      %v914 = vmax.f32 %v850, 0.0
      %v915 = vmax.f32 %v853, 0.0
      %v916 = vmax.f32 %v856, 0.0
      %v917 = vmax.f32 %v859, 0.0
      %v918 = vmax.f32 %v862, 0.0
      %v919 = vmax.f32 %v865, 0.0
      %v920 = vmax.f32 %v868, 0.0
      %v921 = vmax.f32 %v871, 0.0
      %v922 = vmax.f32 %v874, 0.0
      %v923 = vmax.f32 %v877, 0.0
      %v924 = vmax.f32 %v880, 0.0
      %v925 = vmax.f32 %v883, 0.0
      %v926 = vmax.f32 %v886, 0.0
      %v927 = vmax.f32 %v889, 0.0
      %v928 = vmax.f32 %v892, 0.0
      %v929 = vmax.f32 %v895, 0.0
      %v930 = vmax.f32 %v898, 0.0
      %v931 = vmax.f32 %v901, 0.0
      %v932 = vmax.f32 %v904, 0.0
      %v933 = vmax.f32 %v907, 0.0
      %v934 = vmax.f32 %v767, %v909
      %v935 = vmax.f32 %v768, %v910
      %v936 = vmax.f32 %v769, %v911
      %v937 = vmax.f32 %v770, %v912
      %v938 = vmax.f32 %v771, %v913
      %v939 = vmax.f32 %v772, %v914
      %v940 = vmax.f32 %v773, %v915
      %v941 = vmax.f32 %v774, %v916
      %v942 = vmax.f32 %v775, %v917
      %v943 = vmax.f32 %v776, %v918
      %v944 = vmax.f32 %v777, %v919
      %v945 = vmax.f32 %v778, %v920
      %v946 = vmax.f32 %v779, %v921
      %v947 = vmax.f32 %v780, %v922
      %v948 = vmax.f32 %v781, %v923
      %v949 = vmax.f32 %v782, %v924
      %v950 = vmax.f32 %v783, %v925
      %v951 = vmax.f32 %v784, %v926
      %v952 = vmax.f32 %v785, %v927
      %v953 = vmax.f32 %v786, %v928
      %v954 = vmax.f32 %v787, %v929
      %v955 = vmax.f32 %v788, %v930
      %v956 = vmax.f32 %v789, %v931
      %v957 = vmax.f32 %v790, %v932
      %v958 = vmax.f32 %v791, %v933
      %v959 = vmax.f32 %v625, %v934
      %v960 = vmax.f32 %v626, %v935
      %v961 = vmax.f32 %v627, %v936
      %v962 = vmax.f32 %v628, %v937
      %v963 = vmax.f32 %v629, %v938
      %v964 = vmax.f32 %v630, %v939
      %v965 = vmax.f32 %v631, %v940
      %v966 = vmax.f32 %v632, %v941
      %v967 = vmax.f32 %v633, %v942
      %v968 = vmax.f32 %v634, %v943
      %v969 = vmax.f32 %v635, %v944
      %v970 = vmax.f32 %v636, %v945
      %v971 = vmax.f32 %v637, %v946
      %v972 = vmax.f32 %v638, %v947
      %v973 = vmax.f32 %v639, %v948
      %v974 = vmax.f32 %v640, %v949
      %v975 = vmax.f32 %v641, %v950
      %v976 = vmax.f32 %v642, %v951
      %v977 = vmax.f32 %v643, %v952
      %v978 = vmax.f32 %v644, %v953
      %v979 = vmax.f32 %v645, %v954
      %v980 = vmax.f32 %v646, %v955
      %v981 = vmax.f32 %v647, %v956
      %v982 = vmax.f32 %v648, %v957
      %v983 = vmax.f32 %v649, %v958
      %984 = vst [vmem:[%s319] sm:$0xff] %v959
      %985 = vst [vmem:[%s319 + $0x8] sm:$0xff] %v960
      %986 = vst [vmem:[%s319 + $0x10] sm:$0xff] %v961
      %987 = vst [vmem:[%s319 + $0x18] sm:$0xff] %v962
      %988 = vst [vmem:[%s319 + $0x20] sm:$0xff] %v963
      %989 = vst [vmem:[%s319 + $0x28] sm:$0xff] %v964
      %990 = vst [vmem:[%s319 + $0x30] sm:$0xff] %v965
      %991 = vst [vmem:[%s319 + $0x38] sm:$0xff] %v966
      %992 = vst [vmem:[%s319 + $0x40] sm:$0xff] %v967
      %993 = vst [vmem:[%s319 + $0x48] sm:$0xff] %v968
      %994 = vst [vmem:[%s319 + $0x50] sm:$0xff] %v969
      %995 = vst [vmem:[%s319 + $0x58] sm:$0xff] %v970
      %996 = vst [vmem:[%s319 + $0x60] sm:$0xff] %v971
      %997 = vst [vmem:[%s319 + $0x68] sm:$0xff] %v972
      %998 = vst [vmem:[%s319 + $0x70] sm:$0xff] %v973
      %999 = vst [vmem:[%s319 + $0x78] sm:$0xff] %v974
      %1000 = vst [vmem:[%s319 + $0x80] sm:$0xff] %v975
      %1001 = vst [vmem:[%s319 + $0x88] sm:$0xff] %v976
      %1002 = vst [vmem:[%s319 + $0x90] sm:$0xff] %v977
      %1003 = vst [vmem:[%s319 + $0x98] sm:$0xff] %v978
      %1004 = vst [vmem:[%s319 + $0xa0] sm:$0xff] %v979
      %1005 = vst [vmem:[%s319 + $0xa8] sm:$0xff] %v980
      %1006 = vst [vmem:[%s319 + $0xb0] sm:$0xff] %v981
      %1007 = vst [vmem:[%s319 + $0xb8] sm:$0xff] %v982
      %1008 = vst [vmem:[%s319 + $0xc0] sm:$0xff] %v983
      %s1009 = smul.u32 25, %s17
      %p1010 = scmp.lt.s32.totalorder %s1009, 49
      %s1011 = scalar_select %p1010, %s1009, 49
      %s1012 = smul.addr %s1011, 8
      %s1013 = scalar_lea.vmem %s6, %s1012
      // Predicated region
      $region45: #{net_forward.3} parent=43 // pred_check
        %p1014 = pneg %p181
      $region46: #{net_forward.3} parent=43 // pred_check_branch
        %1016 = sbr.rel (%p1014) target = $region48
      $region47: #{net_forward.3} parent=43 // pred_region
        %s1017 = smul.u32 25, %s17
      $region48: #{net_forward.3} parent=43 // pred_fallthru
        _
    $region44: #{net_forward.3} parent=5 // pred_fallthru
      _
    %p1018 = scmp.le.s32.totalorder 2, %s12
    // Predicated region
    $region49: #{net_forward.3} parent=5 // pred_check
      %p1019 = pneg %p1018
    $region50: #{net_forward.3} parent=5 // pred_check_branch
      %1021 = sbr.rel (%p1019) target = $region52
    $region51: #{net_forward.3} parent=5 // pred_region
      %s1022 = ssub.s32 %s12, 2
      // Predicated region
      $region53: #{net_forward.3} parent=51 // pred_check
        %p1023 = pneg %p187
      $region54: #{net_forward.3} parent=51 // pred_check_branch
        %1025 = sbr.rel (%p1023) target = $region56
      $region55: #{net_forward.3} parent=51 // pred_region
        %s1026 = smul.u32 25, %s18
        %p1027 = scmp.lt.s32.totalorder %s1026, 49
        %s1028 = scalar_select %p1027, %s1026, 49
        %s1029 = smul.addr %s1028, 8
        %s1030 = scalar_lea.vmem %s6, %s1029
      $region56: #{net_forward.3} parent=51 // pred_fallthru
        _
    $region52: #{net_forward.3} parent=5 // pred_fallthru
      _
  $region6: #{net_forward.3} parent=0 // loop_footer
    %s16 = sadd.s32 1, %s12
  $region7: #{net_forward.3} parent=0 // loop_footer_branch
    %11 = sbr.rel target = $region3
  $region8: #{net_forward.3} parent=0 // loop_exit
    _

// kernel: net_forward.4
$region0: #{net_forward.4}
  #allocation0 [shape = 'u32[]', space=smem, size = 0x4, offset = 0x4, fixed_abs, tag = 'smem constant byte address 0x4 - core index']
  #allocation1 [shape = 'u32[72,128]{1,0:T(1,128)}', space=vmem, size = 0x9000, scoped, tag = 'internal scratch']
  %s0 = inlined_call_operand.vmem [shape: f32[56,256], index: 0, kind: input, shape index: {}]
  %s1 = inlined_call_operand.vmem [shape: f32[56,256], index: 1, kind: input, shape index: {}]
  %s2 = inlined_call_operand.vmem [shape: f32[56,256], index: 2, kind: input, shape index: {}]
  %s3 = inlined_call_operand.vmem [shape: f32[56,256], index: 3, kind: input, shape index: {}]
  %s4 = inlined_call_operand.vmem [shape: f32[256,128], index: 4, kind: input, shape index: {}]
  %s5 = inlined_call_operand.vmem [shape: f32[1,128], index: 5, kind: input, shape index: {}]
  %s6 = inlined_call_operand.vmem [shape: f32[56,128], index: 6, kind: output, shape index: {}]
  %s7 = sld [smem:[#allocation0]]
  $region34: #{net_forward.4} parent=0
    _
  %s9 = ssub.s32 1, %s7
  %s10 = scalar_select 0, %s9, %s7
  // Predicated region
  $region2: #{net_forward.4} parent=0 // pred_check
    _
  $region3: #{net_forward.4} parent=0 // pred_check_branch
    %12 = sbr.rel (0) target = $region5
  $region4: #{net_forward.4} parent=0 // pred_region
    _
  $region5: #{net_forward.4} parent=0 // pred_fallthru
    _
  // Predicated region
  $region6: #{net_forward.4} parent=0 // pred_check
    _
  $region7: #{net_forward.4} parent=0 // pred_check_branch
    %14 = sbr.rel (0) target = $region9
  $region8: #{net_forward.4} parent=0 // pred_region
    _
  $region9: #{net_forward.4} parent=0 // pred_fallthru
    _
  // Predicated region
  $region10: #{net_forward.4} parent=0 // pred_check
    _
  $region11: #{net_forward.4} parent=0 // pred_check_branch
    %16 = sbr.rel (0) target = $region13
  $region12: #{net_forward.4} parent=0 // pred_region
    _
  $region13: #{net_forward.4} parent=0 // pred_fallthru
    _
  // Predicated region
  $region14: #{net_forward.4} parent=0 // pred_check
    _
  $region15: #{net_forward.4} parent=0 // pred_check_branch
    %18 = sbr.rel (0) target = $region17
  $region16: #{net_forward.4} parent=0 // pred_region
    _
  $region17: #{net_forward.4} parent=0 // pred_fallthru
    _
  // Predicated region
  $region18: #{net_forward.4} parent=0 // pred_check
    _
  $region19: #{net_forward.4} parent=0 // pred_check_branch
    %20 = sbr.rel (0) target = $region21
  $region20: #{net_forward.4} parent=0 // pred_region
    _
  $region21: #{net_forward.4} parent=0 // pred_fallthru
    _
  // Predicated region
  $region22: #{net_forward.4} parent=0 // pred_check
    _
  $region23: #{net_forward.4} parent=0 // pred_check_branch
    %22 = sbr.rel (0) target = $region25
  $region24: #{net_forward.4} parent=0 // pred_region
    _
  $region25: #{net_forward.4} parent=0 // pred_fallthru
    _
  %v23 = vld [vmem:[%s4] sm:$0xff]
  %v24 = vld [vmem:[%s4 + $0x8] sm:$0xff]
  %v25 = vld [vmem:[%s4 + $0x10] sm:$0xff]
  %v26 = vld [vmem:[%s4 + $0x18] sm:$0xff]
  %v27 = vld [vmem:[%s4 + $0x20] sm:$0xff]
  %v28 = vld [vmem:[%s4 + $0x28] sm:$0xff]
  %v29 = vld [vmem:[%s4 + $0x30] sm:$0xff]
  %v30 = vld [vmem:[%s4 + $0x38] sm:$0xff]
  %v31 = vld [vmem:[%s4 + $0x40] sm:$0xff]
  %v32 = vld [vmem:[%s4 + $0x48] sm:$0xff]
  %v33 = vld [vmem:[%s4 + $0x50] sm:$0xff]
  %v34 = vld [vmem:[%s4 + $0x58] sm:$0xff]
  %v35 = vld [vmem:[%s4 + $0x60] sm:$0xff]
  %v36 = vld [vmem:[%s4 + $0x68] sm:$0xff]
  %v37 = vld [vmem:[%s4 + $0x70] sm:$0xff]
  %v38 = vld [vmem:[%s4 + $0x78] sm:$0xff]
  %v39 = vld [vmem:[%s4 + $0x80] sm:$0xff]
  %v40 = vld [vmem:[%s4 + $0x88] sm:$0xff]
  %v41 = vld [vmem:[%s4 + $0x90] sm:$0xff]
  %v42 = vld [vmem:[%s4 + $0x98] sm:$0xff]
  %v43 = vld [vmem:[%s4 + $0xa0] sm:$0xff]
  %v44 = vld [vmem:[%s4 + $0xa8] sm:$0xff]
  %v45 = vld [vmem:[%s4 + $0xb0] sm:$0xff]
  %v46 = vld [vmem:[%s4 + $0xb8] sm:$0xff]
  %v47 = vld [vmem:[%s4 + $0xc0] sm:$0xff]
  %v48 = vld [vmem:[%s4 + $0xc8] sm:$0xff]
  %v49 = vld [vmem:[%s4 + $0xd0] sm:$0xff]
  %v50 = vld [vmem:[%s4 + $0xd8] sm:$0xff]
  %v51 = vld [vmem:[%s4 + $0xe0] sm:$0xff]
  %v52 = vld [vmem:[%s4 + $0xe8] sm:$0xff]
  %v53 = vld [vmem:[%s4 + $0xf0] sm:$0xff]
  %v54 = vld [vmem:[%s4 + $0xf8] sm:$0xff]
  %v55 = vld [vmem:[%s5] sm:$0x1]
  %v56 = vld [vmem:[%s0] sm:$0xff]
  %v57 = vld [vmem:[%s0 + $0x8] sm:$0xff]
  %v58 = vld [vmem:[%s0 + $0x10] sm:$0xff]
  %v59 = vld [vmem:[%s0 + $0x18] sm:$0xff]
  %v60 = vld [vmem:[%s0 + $0x20] sm:$0xff]
  %v61 = vld [vmem:[%s0 + $0x28] sm:$0xff]
  %v62 = vld [vmem:[%s0 + $0x30] sm:$0xff]
  %v63 = vld [vmem:[%s0 + $0x38] sm:$0xff]
  %v64 = vld [vmem:[%s0 + $0x40] sm:$0xff]
  %v65 = vld [vmem:[%s0 + $0x48] sm:$0xff]
  %v66 = vld [vmem:[%s0 + $0x50] sm:$0xff]
  %v67 = vld [vmem:[%s0 + $0x58] sm:$0xff]
  %v68 = vld [vmem:[%s0 + $0x60] sm:$0xff]
  %v69 = vld [vmem:[%s0 + $0x68] sm:$0xff]
  %v71 = vperm.slane %v55, 0
  %73 = vmatpush.msra.mxu0 %v38
  %74 = vmatpush.msra.mxu0 %v37
  %75 = vmatpush.msra.mxu0 %v36
  %76 = vmatpush.msra.mxu0 %v35
  %77 = vmatpush.msra.mxu0 %v34
  %78 = vmatpush.msra.mxu0 %v33
  %79 = vmatpush.msra.mxu0 %v32
  %80 = vmatpush.msra.mxu0 %v31
  %81 = vmatpush.msra.mxu0 %v30
  %82 = vmatpush.msra.mxu0 %v29
  %83 = vmatpush.msra.mxu0 %v28
  %84 = vmatpush.msra.mxu0 %v27
  %85 = vmatpush.msra.mxu0 %v26
  %86 = vmatpush.msra.mxu0 %v25
  %87 = vmatpush.msra.mxu0 %v24
  %88 = vmatpush.msra.mxu0 %v23
  %89 = vmatmul.f32.gmra.mxu0 %v56
  %v90 = vpop.f32.mrf.mxu0
  %v91 = vadd.f32 %v71, %v90
  %92 = vmatmul.f32.gmra.mxu0 %v58
  %v93 = vpop.f32.mrf.mxu0
  %v94 = vadd.f32 %v71, %v93
  %95 = vmatmul.f32.gmra.mxu0 %v60
  %v96 = vpop.f32.mrf.mxu0
  %v97 = vadd.f32 %v71, %v96
  %98 = vmatmul.f32.gmra.mxu0 %v62
  %v99 = vpop.f32.mrf.mxu0
  %v100 = vadd.f32 %v71, %v99
  %101 = vmatmul.f32.gmra.mxu0 %v64
  %v102 = vpop.f32.mrf.mxu0
  %v103 = vadd.f32 %v71, %v102
  %104 = vmatmul.f32.gmra.mxu0 %v66
  %v105 = vpop.f32.mrf.mxu0
  %v106 = vadd.f32 %v71, %v105
  %107 = vmatmul.f32.gmra.mxu0 %v68
  %v108 = vpop.f32.mrf.mxu0
  %v109 = vadd.f32 %v71, %v108
  %110 = vdwg.mxu0
  %111 = vmatpush.msra.mxu0 %v54
  %112 = vmatpush.msra.mxu0 %v53
  %113 = vmatpush.msra.mxu0 %v52
  %114 = vmatpush.msra.mxu0 %v51
  %115 = vmatpush.msra.mxu0 %v50
  %116 = vmatpush.msra.mxu0 %v49
  %117 = vmatpush.msra.mxu0 %v48
  %118 = vmatpush.msra.mxu0 %v47
  %119 = vmatpush.msra.mxu0 %v46
  %120 = vmatpush.msra.mxu0 %v45
  %121 = vmatpush.msra.mxu0 %v44
  %122 = vmatpush.msra.mxu0 %v43
  %123 = vmatpush.msra.mxu0 %v42
  %124 = vmatpush.msra.mxu0 %v41
  %125 = vmatpush.msra.mxu0 %v40
  %126 = vmatpush.msra.mxu0 %v39
  %127 = vmatmul.f32.gmra.mxu0 %v57
  %v128 = vpop.f32.mrf.mxu0
  %v129 = vadd.f32 %v91, %v128
  %130 = vmatmul.f32.gmra.mxu0 %v59
  %v131 = vpop.f32.mrf.mxu0
  %v132 = vadd.f32 %v94, %v131
  %133 = vmatmul.f32.gmra.mxu0 %v61
  %v134 = vpop.f32.mrf.mxu0
  %v135 = vadd.f32 %v97, %v134
  %136 = vmatmul.f32.gmra.mxu0 %v63
  %v137 = vpop.f32.mrf.mxu0
  %v138 = vadd.f32 %v100, %v137
  %139 = vmatmul.f32.gmra.mxu0 %v65
  %v140 = vpop.f32.mrf.mxu0
  %v141 = vadd.f32 %v103, %v140
  %142 = vmatmul.f32.gmra.mxu0 %v67
  %v143 = vpop.f32.mrf.mxu0
  %v144 = vadd.f32 %v106, %v143
  %145 = vmatmul.f32.gmra.mxu0 %v69
  %v146 = vpop.f32.mrf.mxu0
  %v147 = vadd.f32 %v109, %v146
  %148 = vdwg.mxu0
  %v149 = vmax.f32 %v129, 0.0
  %v150 = vmax.f32 %v132, 0.0
  %v151 = vmax.f32 %v135, 0.0
  %v152 = vmax.f32 %v138, 0.0
  %v153 = vmax.f32 %v141, 0.0
  %v154 = vmax.f32 %v144, 0.0
  %v155 = vmax.f32 %v147, 0.0
  %v156 = vld [vmem:[%s1] sm:$0xff]
  %v157 = vld [vmem:[%s1 + $0x8] sm:$0xff]
  %v158 = vld [vmem:[%s1 + $0x10] sm:$0xff]
  %v159 = vld [vmem:[%s1 + $0x18] sm:$0xff]
  %v160 = vld [vmem:[%s1 + $0x20] sm:$0xff]
  %v161 = vld [vmem:[%s1 + $0x28] sm:$0xff]
  %v162 = vld [vmem:[%s1 + $0x30] sm:$0xff]
  %v163 = vld [vmem:[%s1 + $0x38] sm:$0xff]
  %v164 = vld [vmem:[%s1 + $0x40] sm:$0xff]
  %v165 = vld [vmem:[%s1 + $0x48] sm:$0xff]
  %v166 = vld [vmem:[%s1 + $0x50] sm:$0xff]
  %v167 = vld [vmem:[%s1 + $0x58] sm:$0xff]
  %v168 = vld [vmem:[%s1 + $0x60] sm:$0xff]
  %v169 = vld [vmem:[%s1 + $0x68] sm:$0xff]
  %170 = vmatpush.msra.mxu0 %v38
  %171 = vmatpush.msra.mxu0 %v37
  %172 = vmatpush.msra.mxu0 %v36
  %173 = vmatpush.msra.mxu0 %v35
  %174 = vmatpush.msra.mxu0 %v34
  %175 = vmatpush.msra.mxu0 %v33
  %176 = vmatpush.msra.mxu0 %v32
  %177 = vmatpush.msra.mxu0 %v31
  %178 = vmatpush.msra.mxu0 %v30
  %179 = vmatpush.msra.mxu0 %v29
  %180 = vmatpush.msra.mxu0 %v28
  %181 = vmatpush.msra.mxu0 %v27
  %182 = vmatpush.msra.mxu0 %v26
  %183 = vmatpush.msra.mxu0 %v25
  %184 = vmatpush.msra.mxu0 %v24
  %185 = vmatpush.msra.mxu0 %v23
  %186 = vmatmul.f32.gmra.mxu0 %v156
  %v187 = vpop.f32.mrf.mxu0
  %v188 = vadd.f32 %v71, %v187
  %189 = vmatmul.f32.gmra.mxu0 %v158
  %v190 = vpop.f32.mrf.mxu0
  %v191 = vadd.f32 %v71, %v190
  %192 = vmatmul.f32.gmra.mxu0 %v160
  %v193 = vpop.f32.mrf.mxu0
  %v194 = vadd.f32 %v71, %v193
  %195 = vmatmul.f32.gmra.mxu0 %v162
  %v196 = vpop.f32.mrf.mxu0
  %v197 = vadd.f32 %v71, %v196
  %198 = vmatmul.f32.gmra.mxu0 %v164
  %v199 = vpop.f32.mrf.mxu0
  %v200 = vadd.f32 %v71, %v199
  %201 = vmatmul.f32.gmra.mxu0 %v166
  %v202 = vpop.f32.mrf.mxu0
  %v203 = vadd.f32 %v71, %v202
  %204 = vmatmul.f32.gmra.mxu0 %v168
  %v205 = vpop.f32.mrf.mxu0
  %v206 = vadd.f32 %v71, %v205
  %207 = vdwg.mxu0
  %208 = vmatpush.msra.mxu0 %v54
  %209 = vmatpush.msra.mxu0 %v53
  %210 = vmatpush.msra.mxu0 %v52
  %211 = vmatpush.msra.mxu0 %v51
  %212 = vmatpush.msra.mxu0 %v50
  %213 = vmatpush.msra.mxu0 %v49
  %214 = vmatpush.msra.mxu0 %v48
  %215 = vmatpush.msra.mxu0 %v47
  %216 = vmatpush.msra.mxu0 %v46
  %217 = vmatpush.msra.mxu0 %v45
  %218 = vmatpush.msra.mxu0 %v44
  %219 = vmatpush.msra.mxu0 %v43
  %220 = vmatpush.msra.mxu0 %v42
  %221 = vmatpush.msra.mxu0 %v41
  %222 = vmatpush.msra.mxu0 %v40
  %223 = vmatpush.msra.mxu0 %v39
  %224 = vmatmul.f32.gmra.mxu0 %v157
  %v225 = vpop.f32.mrf.mxu0
  %v226 = vadd.f32 %v188, %v225
  %227 = vmatmul.f32.gmra.mxu0 %v159
  %v228 = vpop.f32.mrf.mxu0
  %v229 = vadd.f32 %v191, %v228
  %230 = vmatmul.f32.gmra.mxu0 %v161
  %v231 = vpop.f32.mrf.mxu0
  %v232 = vadd.f32 %v194, %v231
  %233 = vmatmul.f32.gmra.mxu0 %v163
  %v234 = vpop.f32.mrf.mxu0
  %v235 = vadd.f32 %v197, %v234
  %236 = vmatmul.f32.gmra.mxu0 %v165
  %v237 = vpop.f32.mrf.mxu0
  %v238 = vadd.f32 %v200, %v237
  %239 = vmatmul.f32.gmra.mxu0 %v167
  %v240 = vpop.f32.mrf.mxu0
  %v241 = vadd.f32 %v203, %v240
  %242 = vmatmul.f32.gmra.mxu0 %v169
  %v243 = vpop.f32.mrf.mxu0
  %v244 = vadd.f32 %v206, %v243
  %245 = vdwg.mxu0
  %v246 = vmax.f32 %v226, 0.0
  %v247 = vmax.f32 %v229, 0.0
  %v248 = vmax.f32 %v232, 0.0
  %v249 = vmax.f32 %v235, 0.0
  %v250 = vmax.f32 %v238, 0.0
  %v251 = vmax.f32 %v241, 0.0
  %v252 = vmax.f32 %v244, 0.0
  %v253 = vmax.f32 %v149, %v246
  %v254 = vmax.f32 %v150, %v247
  %v255 = vmax.f32 %v151, %v248
  %v256 = vmax.f32 %v152, %v249
  %v257 = vmax.f32 %v153, %v250
  %v258 = vmax.f32 %v154, %v251
  %v259 = vmax.f32 %v155, %v252
  %v260 = vld [vmem:[%s2] sm:$0xff]
  %v261 = vld [vmem:[%s2 + $0x8] sm:$0xff]
  %v262 = vld [vmem:[%s2 + $0x10] sm:$0xff]
  %v263 = vld [vmem:[%s2 + $0x18] sm:$0xff]
  %v264 = vld [vmem:[%s2 + $0x20] sm:$0xff]
  %v265 = vld [vmem:[%s2 + $0x28] sm:$0xff]
  %v266 = vld [vmem:[%s2 + $0x30] sm:$0xff]
  %v267 = vld [vmem:[%s2 + $0x38] sm:$0xff]
  %v268 = vld [vmem:[%s2 + $0x40] sm:$0xff]
  %v269 = vld [vmem:[%s2 + $0x48] sm:$0xff]
  %v270 = vld [vmem:[%s2 + $0x50] sm:$0xff]
  %v271 = vld [vmem:[%s2 + $0x58] sm:$0xff]
  %v272 = vld [vmem:[%s2 + $0x60] sm:$0xff]
  %v273 = vld [vmem:[%s2 + $0x68] sm:$0xff]
  %274 = vmatpush.msra.mxu0 %v38
  %275 = vmatpush.msra.mxu0 %v37
  %276 = vmatpush.msra.mxu0 %v36
  %277 = vmatpush.msra.mxu0 %v35
  %278 = vmatpush.msra.mxu0 %v34
  %279 = vmatpush.msra.mxu0 %v33
  %280 = vmatpush.msra.mxu0 %v32
  %281 = vmatpush.msra.mxu0 %v31
  %282 = vmatpush.msra.mxu0 %v30
  %283 = vmatpush.msra.mxu0 %v29
  %284 = vmatpush.msra.mxu0 %v28
  %285 = vmatpush.msra.mxu0 %v27
  %286 = vmatpush.msra.mxu0 %v26
  %287 = vmatpush.msra.mxu0 %v25
  %288 = vmatpush.msra.mxu0 %v24
  %289 = vmatpush.msra.mxu0 %v23
  %290 = vmatmul.f32.gmra.mxu0 %v260
  %v291 = vpop.f32.mrf.mxu0
  %v292 = vadd.f32 %v71, %v291
  %293 = vmatmul.f32.gmra.mxu0 %v262
  %v294 = vpop.f32.mrf.mxu0
  %v295 = vadd.f32 %v71, %v294
  %296 = vmatmul.f32.gmra.mxu0 %v264
  %v297 = vpop.f32.mrf.mxu0
  %v298 = vadd.f32 %v71, %v297
  %299 = vmatmul.f32.gmra.mxu0 %v266
  %v300 = vpop.f32.mrf.mxu0
  %v301 = vadd.f32 %v71, %v300
  %302 = vmatmul.f32.gmra.mxu0 %v268
  %v303 = vpop.f32.mrf.mxu0
  %v304 = vadd.f32 %v71, %v303
  %305 = vmatmul.f32.gmra.mxu0 %v270
  %v306 = vpop.f32.mrf.mxu0
  %v307 = vadd.f32 %v71, %v306
  %308 = vmatmul.f32.gmra.mxu0 %v272
  %v309 = vpop.f32.mrf.mxu0
  %v310 = vadd.f32 %v71, %v309
  %311 = vdwg.mxu0
  %312 = vmatpush.msra.mxu0 %v54
  %313 = vmatpush.msra.mxu0 %v53
  %314 = vmatpush.msra.mxu0 %v52
  %315 = vmatpush.msra.mxu0 %v51
  %316 = vmatpush.msra.mxu0 %v50
  %317 = vmatpush.msra.mxu0 %v49
  %318 = vmatpush.msra.mxu0 %v48
  %319 = vmatpush.msra.mxu0 %v47
  %320 = vmatpush.msra.mxu0 %v46
  %321 = vmatpush.msra.mxu0 %v45
  %322 = vmatpush.msra.mxu0 %v44
  %323 = vmatpush.msra.mxu0 %v43
  %324 = vmatpush.msra.mxu0 %v42
  %325 = vmatpush.msra.mxu0 %v41
  %326 = vmatpush.msra.mxu0 %v40
  %327 = vmatpush.msra.mxu0 %v39
  %328 = vmatmul.f32.gmra.mxu0 %v261
  %v329 = vpop.f32.mrf.mxu0
  %v330 = vadd.f32 %v292, %v329
  %331 = vmatmul.f32.gmra.mxu0 %v263
  %v332 = vpop.f32.mrf.mxu0
  %v333 = vadd.f32 %v295, %v332
  %334 = vmatmul.f32.gmra.mxu0 %v265
  %v335 = vpop.f32.mrf.mxu0
  %v336 = vadd.f32 %v298, %v335
  %337 = vmatmul.f32.gmra.mxu0 %v267
  %v338 = vpop.f32.mrf.mxu0
  %v339 = vadd.f32 %v301, %v338
  %340 = vmatmul.f32.gmra.mxu0 %v269
  %v341 = vpop.f32.mrf.mxu0
  %v342 = vadd.f32 %v304, %v341
  %343 = vmatmul.f32.gmra.mxu0 %v271
  %v344 = vpop.f32.mrf.mxu0
  %v345 = vadd.f32 %v307, %v344
  %346 = vmatmul.f32.gmra.mxu0 %v273
  %v347 = vpop.f32.mrf.mxu0
  %v348 = vadd.f32 %v310, %v347
  %349 = vdwg.mxu0
  %v350 = vmax.f32 %v330, 0.0
  %v351 = vmax.f32 %v333, 0.0
  %v352 = vmax.f32 %v336, 0.0
  %v353 = vmax.f32 %v339, 0.0
  %v354 = vmax.f32 %v342, 0.0
  %v355 = vmax.f32 %v345, 0.0
  %v356 = vmax.f32 %v348, 0.0
  %v357 = vld [vmem:[%s3] sm:$0xff]
  %v358 = vld [vmem:[%s3 + $0x8] sm:$0xff]
  %v359 = vld [vmem:[%s3 + $0x10] sm:$0xff]
  %v360 = vld [vmem:[%s3 + $0x18] sm:$0xff]
  %v361 = vld [vmem:[%s3 + $0x20] sm:$0xff]
  %v362 = vld [vmem:[%s3 + $0x28] sm:$0xff]
  %v363 = vld [vmem:[%s3 + $0x30] sm:$0xff]
  %v364 = vld [vmem:[%s3 + $0x38] sm:$0xff]
  %v365 = vld [vmem:[%s3 + $0x40] sm:$0xff]
  %v366 = vld [vmem:[%s3 + $0x48] sm:$0xff]
  %v367 = vld [vmem:[%s3 + $0x50] sm:$0xff]
  %v368 = vld [vmem:[%s3 + $0x58] sm:$0xff]
  %v369 = vld [vmem:[%s3 + $0x60] sm:$0xff]
  %v370 = vld [vmem:[%s3 + $0x68] sm:$0xff]
  %371 = vmatpush.msra.mxu0 %v38
  %372 = vmatpush.msra.mxu0 %v37
  %373 = vmatpush.msra.mxu0 %v36
  %374 = vmatpush.msra.mxu0 %v35
  %375 = vmatpush.msra.mxu0 %v34
  %376 = vmatpush.msra.mxu0 %v33
  %377 = vmatpush.msra.mxu0 %v32
  %378 = vmatpush.msra.mxu0 %v31
  %379 = vmatpush.msra.mxu0 %v30
  %380 = vmatpush.msra.mxu0 %v29
  %381 = vmatpush.msra.mxu0 %v28
  %382 = vmatpush.msra.mxu0 %v27
  %383 = vmatpush.msra.mxu0 %v26
  %384 = vmatpush.msra.mxu0 %v25
  %385 = vmatpush.msra.mxu0 %v24
  %386 = vmatpush.msra.mxu0 %v23
  %387 = vmatmul.f32.gmra.mxu0 %v357
  %v388 = vpop.f32.mrf.mxu0
  %v389 = vadd.f32 %v71, %v388
  %390 = vmatmul.f32.gmra.mxu0 %v359
  %v391 = vpop.f32.mrf.mxu0
  %v392 = vadd.f32 %v71, %v391
  %393 = vmatmul.f32.gmra.mxu0 %v361
  %v394 = vpop.f32.mrf.mxu0
  %v395 = vadd.f32 %v71, %v394
  %396 = vmatmul.f32.gmra.mxu0 %v363
  %v397 = vpop.f32.mrf.mxu0
  %v398 = vadd.f32 %v71, %v397
  %399 = vmatmul.f32.gmra.mxu0 %v365
  %v400 = vpop.f32.mrf.mxu0
  %v401 = vadd.f32 %v71, %v400
  %402 = vmatmul.f32.gmra.mxu0 %v367
  %v403 = vpop.f32.mrf.mxu0
  %v404 = vadd.f32 %v71, %v403
  %405 = vmatmul.f32.gmra.mxu0 %v369
  %v406 = vpop.f32.mrf.mxu0
  %v407 = vadd.f32 %v71, %v406
  %408 = vdwg.mxu0
  %409 = vmatpush.msra.mxu0 %v54
  %410 = vmatpush.msra.mxu0 %v53
  %411 = vmatpush.msra.mxu0 %v52
  %412 = vmatpush.msra.mxu0 %v51
  %413 = vmatpush.msra.mxu0 %v50
  %414 = vmatpush.msra.mxu0 %v49
  %415 = vmatpush.msra.mxu0 %v48
  %416 = vmatpush.msra.mxu0 %v47
  %417 = vmatpush.msra.mxu0 %v46
  %418 = vmatpush.msra.mxu0 %v45
  %419 = vmatpush.msra.mxu0 %v44
  %420 = vmatpush.msra.mxu0 %v43
  %421 = vmatpush.msra.mxu0 %v42
  %422 = vmatpush.msra.mxu0 %v41
  %423 = vmatpush.msra.mxu0 %v40
  %424 = vmatpush.msra.mxu0 %v39
  %425 = vmatmul.f32.gmra.mxu0 %v358
  %v426 = vpop.f32.mrf.mxu0
  %v427 = vadd.f32 %v389, %v426
  %428 = vmatmul.f32.gmra.mxu0 %v360
  %v429 = vpop.f32.mrf.mxu0
  %v430 = vadd.f32 %v392, %v429
  %431 = vmatmul.f32.gmra.mxu0 %v362
  %v432 = vpop.f32.mrf.mxu0
  %v433 = vadd.f32 %v395, %v432
  %434 = vmatmul.f32.gmra.mxu0 %v364
  %v435 = vpop.f32.mrf.mxu0
  %v436 = vadd.f32 %v398, %v435
  %437 = vmatmul.f32.gmra.mxu0 %v366
  %v438 = vpop.f32.mrf.mxu0
  %v439 = vadd.f32 %v401, %v438
  %440 = vmatmul.f32.gmra.mxu0 %v368
  %v441 = vpop.f32.mrf.mxu0
  %v442 = vadd.f32 %v404, %v441
  %443 = vmatmul.f32.gmra.mxu0 %v370
  %v444 = vpop.f32.mrf.mxu0
  %v445 = vadd.f32 %v407, %v444
  %446 = vdwg.mxu0
  %v447 = vmax.f32 %v427, 0.0
  %v448 = vmax.f32 %v430, 0.0
  %v449 = vmax.f32 %v433, 0.0
  %v450 = vmax.f32 %v436, 0.0
  %v451 = vmax.f32 %v439, 0.0
  %v452 = vmax.f32 %v442, 0.0
  %v453 = vmax.f32 %v445, 0.0
  %v454 = vmax.f32 %v350, %v447
  %v455 = vmax.f32 %v351, %v448
  %v456 = vmax.f32 %v352, %v449
  %v457 = vmax.f32 %v353, %v450
  %v458 = vmax.f32 %v354, %v451
  %v459 = vmax.f32 %v355, %v452
  %v460 = vmax.f32 %v356, %v453
  %v461 = vmax.f32 %v253, %v454
  %v462 = vmax.f32 %v254, %v455
  %v463 = vmax.f32 %v255, %v456
  %v464 = vmax.f32 %v256, %v457
  %v465 = vmax.f32 %v257, %v458
  %v466 = vmax.f32 %v258, %v459
  %v467 = vmax.f32 %v259, %v460
  %468 = vst [vmem:[%s6] sm:$0xff] %v461
  %469 = vst [vmem:[%s6 + $0x8] sm:$0xff] %v462
  %470 = vst [vmem:[%s6 + $0x10] sm:$0xff] %v463
  %471 = vst [vmem:[%s6 + $0x18] sm:$0xff] %v464
  %472 = vst [vmem:[%s6 + $0x20] sm:$0xff] %v465
  %473 = vst [vmem:[%s6 + $0x28] sm:$0xff] %v466
  %474 = vst [vmem:[%s6 + $0x30] sm:$0xff] %v467
  // Predicated region
  $region26: #{net_forward.4} parent=0 // pred_check
    _
  $region27: #{net_forward.4} parent=0 // pred_check_branch
    %476 = sbr.rel (0) target = $region29
  $region28: #{net_forward.4} parent=0 // pred_region
    _
  $region29: #{net_forward.4} parent=0 // pred_fallthru
    _
  // Predicated region
  $region30: #{net_forward.4} parent=0 // pred_check
    _
  $region31: #{net_forward.4} parent=0 // pred_check_branch
    %478 = sbr.rel (0) target = $region33
  $region32: #{net_forward.4} parent=0 // pred_region
    _
  $region33: #{net_forward.4} parent=0 // pred_fallthru
    _

// kernel: net_forward.5
$region0: #{net_forward.5}
  #allocation0 [shape = 'u32[]', space=smem, size = 0x4, offset = 0x4, fixed_abs, tag = 'smem constant byte address 0x4 - core index']
  #allocation1 [shape = 'u32[72,128]{1,0:T(1,128)}', space=vmem, size = 0x9000, scoped, tag = 'internal scratch']
  %s0 = inlined_call_operand.vmem [shape: f32[8,512], index: 0, kind: input, shape index: {}]
  %s1 = inlined_call_operand.vmem [shape: f32[512,128], index: 1, kind: input, shape index: {}]
  %s2 = inlined_call_operand.vmem [shape: f32[1,128], index: 2, kind: input, shape index: {}]
  %s3 = inlined_call_operand.vmem [shape: f32[128,128], index: 3, kind: input, shape index: {}]
  %s4 = inlined_call_operand.vmem [shape: f32[1,128], index: 4, kind: input, shape index: {}]
  %s5 = inlined_call_operand.vmem [shape: f32[128,128], index: 5, kind: input, shape index: {}]
  %s6 = inlined_call_operand.vmem [shape: f32[1,128], index: 6, kind: input, shape index: {}]
  %s7 = inlined_call_operand.vmem [shape: f32[8,128], index: 7, kind: output, shape index: {}]
  %s8 = sld [smem:[#allocation0]]
  $region38: #{net_forward.5} parent=0
    _
  %s10 = ssub.s32 1, %s8
  %s11 = scalar_select 0, %s10, %s8
  // Predicated region
  $region2: #{net_forward.5} parent=0 // pred_check
    _
  $region3: #{net_forward.5} parent=0 // pred_check_branch
    %13 = sbr.rel (0) target = $region5
  $region4: #{net_forward.5} parent=0 // pred_region
    _
  $region5: #{net_forward.5} parent=0 // pred_fallthru
    _
  // Predicated region
  $region6: #{net_forward.5} parent=0 // pred_check
    _
  $region7: #{net_forward.5} parent=0 // pred_check_branch
    %15 = sbr.rel (0) target = $region9
  $region8: #{net_forward.5} parent=0 // pred_region
    _
  $region9: #{net_forward.5} parent=0 // pred_fallthru
    _
  // Predicated region
  $region10: #{net_forward.5} parent=0 // pred_check
    _
  $region11: #{net_forward.5} parent=0 // pred_check_branch
    %17 = sbr.rel (0) target = $region13
  $region12: #{net_forward.5} parent=0 // pred_region
    _
  $region13: #{net_forward.5} parent=0 // pred_fallthru
    _
  // Predicated region
  $region14: #{net_forward.5} parent=0 // pred_check
    _
  $region15: #{net_forward.5} parent=0 // pred_check_branch
    %19 = sbr.rel (0) target = $region17
  $region16: #{net_forward.5} parent=0 // pred_region
    _
  $region17: #{net_forward.5} parent=0 // pred_fallthru
    _
  // Predicated region
  $region18: #{net_forward.5} parent=0 // pred_check
    _
  $region19: #{net_forward.5} parent=0 // pred_check_branch
    %21 = sbr.rel (0) target = $region21
  $region20: #{net_forward.5} parent=0 // pred_region
    _
  $region21: #{net_forward.5} parent=0 // pred_fallthru
    _
  // Predicated region
  $region22: #{net_forward.5} parent=0 // pred_check
    _
  $region23: #{net_forward.5} parent=0 // pred_check_branch
    %23 = sbr.rel (0) target = $region25
  $region24: #{net_forward.5} parent=0 // pred_region
    _
  $region25: #{net_forward.5} parent=0 // pred_fallthru
    _
  // Predicated region
  $region26: #{net_forward.5} parent=0 // pred_check
    _
  $region27: #{net_forward.5} parent=0 // pred_check_branch
    %25 = sbr.rel (0) target = $region29
  $region28: #{net_forward.5} parent=0 // pred_region
    _
  $region29: #{net_forward.5} parent=0 // pred_fallthru
    _
  %v26 = vld [vmem:[%s0] sm:$0xff]
  %v27 = vld [vmem:[%s0 + $0x8] sm:$0xff]
  %v28 = vld [vmem:[%s0 + $0x10] sm:$0xff]
  %v29 = vld [vmem:[%s0 + $0x18] sm:$0xff]
  %v30 = vld [vmem:[%s1] sm:$0xff]
  %v31 = vld [vmem:[%s1 + $0x8] sm:$0xff]
  %v32 = vld [vmem:[%s1 + $0x10] sm:$0xff]
  %v33 = vld [vmem:[%s1 + $0x18] sm:$0xff]
  %v34 = vld [vmem:[%s1 + $0x20] sm:$0xff]
  %v35 = vld [vmem:[%s1 + $0x28] sm:$0xff]
  %v36 = vld [vmem:[%s1 + $0x30] sm:$0xff]
  %v37 = vld [vmem:[%s1 + $0x38] sm:$0xff]
  %v38 = vld [vmem:[%s1 + $0x40] sm:$0xff]
  %v39 = vld [vmem:[%s1 + $0x48] sm:$0xff]
  %v40 = vld [vmem:[%s1 + $0x50] sm:$0xff]
  %v41 = vld [vmem:[%s1 + $0x58] sm:$0xff]
  %v42 = vld [vmem:[%s1 + $0x60] sm:$0xff]
  %v43 = vld [vmem:[%s1 + $0x68] sm:$0xff]
  %v44 = vld [vmem:[%s1 + $0x70] sm:$0xff]
  %v45 = vld [vmem:[%s1 + $0x78] sm:$0xff]
  %v46 = vld [vmem:[%s1 + $0x80] sm:$0xff]
  %v47 = vld [vmem:[%s1 + $0x88] sm:$0xff]
  %v48 = vld [vmem:[%s1 + $0x90] sm:$0xff]
  %v49 = vld [vmem:[%s1 + $0x98] sm:$0xff]
  %v50 = vld [vmem:[%s1 + $0xa0] sm:$0xff]
  %v51 = vld [vmem:[%s1 + $0xa8] sm:$0xff]
  %v52 = vld [vmem:[%s1 + $0xb0] sm:$0xff]
  %v53 = vld [vmem:[%s1 + $0xb8] sm:$0xff]
  %v54 = vld [vmem:[%s1 + $0xc0] sm:$0xff]
  %v55 = vld [vmem:[%s1 + $0xc8] sm:$0xff]
  %v56 = vld [vmem:[%s1 + $0xd0] sm:$0xff]
  %v57 = vld [vmem:[%s1 + $0xd8] sm:$0xff]
  %v58 = vld [vmem:[%s1 + $0xe0] sm:$0xff]
  %v59 = vld [vmem:[%s1 + $0xe8] sm:$0xff]
  %v60 = vld [vmem:[%s1 + $0xf0] sm:$0xff]
  %v61 = vld [vmem:[%s1 + $0xf8] sm:$0xff]
  %v62 = vld [vmem:[%s1 + $0x100] sm:$0xff]
  %v63 = vld [vmem:[%s1 + $0x108] sm:$0xff]
  %v64 = vld [vmem:[%s1 + $0x110] sm:$0xff]
  %v65 = vld [vmem:[%s1 + $0x118] sm:$0xff]
  %v66 = vld [vmem:[%s1 + $0x120] sm:$0xff]
  %v67 = vld [vmem:[%s1 + $0x128] sm:$0xff]
  %v68 = vld [vmem:[%s1 + $0x130] sm:$0xff]
  %v69 = vld [vmem:[%s1 + $0x138] sm:$0xff]
  %v70 = vld [vmem:[%s1 + $0x140] sm:$0xff]
  %v71 = vld [vmem:[%s1 + $0x148] sm:$0xff]
  %v72 = vld [vmem:[%s1 + $0x150] sm:$0xff]
  %v73 = vld [vmem:[%s1 + $0x158] sm:$0xff]
  %v74 = vld [vmem:[%s1 + $0x160] sm:$0xff]
  %v75 = vld [vmem:[%s1 + $0x168] sm:$0xff]
  %v76 = vld [vmem:[%s1 + $0x170] sm:$0xff]
  %v77 = vld [vmem:[%s1 + $0x178] sm:$0xff]
  %v78 = vld [vmem:[%s1 + $0x180] sm:$0xff]
  %v79 = vld [vmem:[%s1 + $0x188] sm:$0xff]
  %v80 = vld [vmem:[%s1 + $0x190] sm:$0xff]
  %v81 = vld [vmem:[%s1 + $0x198] sm:$0xff]
  %v82 = vld [vmem:[%s1 + $0x1a0] sm:$0xff]
  %v83 = vld [vmem:[%s1 + $0x1a8] sm:$0xff]
  %v84 = vld [vmem:[%s1 + $0x1b0] sm:$0xff]
  %v85 = vld [vmem:[%s1 + $0x1b8] sm:$0xff]
  %v86 = vld [vmem:[%s1 + $0x1c0] sm:$0xff]
  %v87 = vld [vmem:[%s1 + $0x1c8] sm:$0xff]
  %v88 = vld [vmem:[%s1 + $0x1d0] sm:$0xff]
  %v89 = vld [vmem:[%s1 + $0x1d8] sm:$0xff]
  %v90 = vld [vmem:[%s1 + $0x1e0] sm:$0xff]
  %v91 = vld [vmem:[%s1 + $0x1e8] sm:$0xff]
  %v92 = vld [vmem:[%s1 + $0x1f0] sm:$0xff]
  %v93 = vld [vmem:[%s1 + $0x1f8] sm:$0xff]
  %v94 = vld [vmem:[%s2] sm:$0x1]
  %v96 = vperm.slane %v94, 0
  %98 = vmatpush.msra.mxu0 %v45
  %99 = vmatpush.msra.mxu0 %v44
  %100 = vmatpush.msra.mxu0 %v43
  %101 = vmatpush.msra.mxu0 %v42
  %102 = vmatpush.msra.mxu0 %v41
  %103 = vmatpush.msra.mxu0 %v40
  %104 = vmatpush.msra.mxu0 %v39
  %105 = vmatpush.msra.mxu0 %v38
  %106 = vmatpush.msra.mxu0 %v37
  %107 = vmatpush.msra.mxu0 %v36
  %108 = vmatpush.msra.mxu0 %v35
  %109 = vmatpush.msra.mxu0 %v34
  %110 = vmatpush.msra.mxu0 %v33
  %111 = vmatpush.msra.mxu0 %v32
  %112 = vmatpush.msra.mxu0 %v31
  %113 = vmatpush.msra.mxu0 %v30
  %114 = vmatmul.f32.gmra.mxu0 %v26
  %v115 = vpop.f32.mrf.mxu0
  %v116 = vadd.f32 %v96, %v115
  %117 = vdwg.mxu0
  %118 = vmatpush.msra.mxu0 %v61
  %119 = vmatpush.msra.mxu0 %v60
  %120 = vmatpush.msra.mxu0 %v59
  %121 = vmatpush.msra.mxu0 %v58
  %122 = vmatpush.msra.mxu0 %v57
  %123 = vmatpush.msra.mxu0 %v56
  %124 = vmatpush.msra.mxu0 %v55
  %125 = vmatpush.msra.mxu0 %v54
  %126 = vmatpush.msra.mxu0 %v53
  %127 = vmatpush.msra.mxu0 %v52
  %128 = vmatpush.msra.mxu0 %v51
  %129 = vmatpush.msra.mxu0 %v50
  %130 = vmatpush.msra.mxu0 %v49
  %131 = vmatpush.msra.mxu0 %v48
  %132 = vmatpush.msra.mxu0 %v47
  %133 = vmatpush.msra.mxu0 %v46
  %134 = vmatmul.f32.gmra.mxu0 %v27
  %v135 = vpop.f32.mrf.mxu0
  %v136 = vadd.f32 %v116, %v135
  %137 = vdwg.mxu0
  %138 = vmatpush.msra.mxu0 %v77
  %139 = vmatpush.msra.mxu0 %v76
  %140 = vmatpush.msra.mxu0 %v75
  %141 = vmatpush.msra.mxu0 %v74
  %142 = vmatpush.msra.mxu0 %v73
  %143 = vmatpush.msra.mxu0 %v72
  %144 = vmatpush.msra.mxu0 %v71
  %145 = vmatpush.msra.mxu0 %v70
  %146 = vmatpush.msra.mxu0 %v69
  %147 = vmatpush.msra.mxu0 %v68
  %148 = vmatpush.msra.mxu0 %v67
  %149 = vmatpush.msra.mxu0 %v66
  %150 = vmatpush.msra.mxu0 %v65
  %151 = vmatpush.msra.mxu0 %v64
  %152 = vmatpush.msra.mxu0 %v63
  %153 = vmatpush.msra.mxu0 %v62
  %154 = vmatmul.f32.gmra.mxu0 %v28
  %v155 = vpop.f32.mrf.mxu0
  %v156 = vadd.f32 %v136, %v155
  %157 = vdwg.mxu0
  %158 = vmatpush.msra.mxu0 %v93
  %159 = vmatpush.msra.mxu0 %v92
  %160 = vmatpush.msra.mxu0 %v91
  %161 = vmatpush.msra.mxu0 %v90
  %162 = vmatpush.msra.mxu0 %v89
  %163 = vmatpush.msra.mxu0 %v88
  %164 = vmatpush.msra.mxu0 %v87
  %165 = vmatpush.msra.mxu0 %v86
  %166 = vmatpush.msra.mxu0 %v85
  %167 = vmatpush.msra.mxu0 %v84
  %168 = vmatpush.msra.mxu0 %v83
  %169 = vmatpush.msra.mxu0 %v82
  %170 = vmatpush.msra.mxu0 %v81
  %171 = vmatpush.msra.mxu0 %v80
  %172 = vmatpush.msra.mxu0 %v79
  %173 = vmatpush.msra.mxu0 %v78
  %174 = vmatmul.f32.gmra.mxu0 %v29
  %v175 = vpop.f32.mrf.mxu0
  %v176 = vadd.f32 %v156, %v175
  %177 = vdwg.mxu0
  %v178 = vmax.f32 %v176, 0.0
  %v179 = vld [vmem:[%s3] sm:$0xff]
  %v180 = vld [vmem:[%s3 + $0x8] sm:$0xff]
  %v181 = vld [vmem:[%s3 + $0x10] sm:$0xff]
  %v182 = vld [vmem:[%s3 + $0x18] sm:$0xff]
  %v183 = vld [vmem:[%s3 + $0x20] sm:$0xff]
  %v184 = vld [vmem:[%s3 + $0x28] sm:$0xff]
  %v185 = vld [vmem:[%s3 + $0x30] sm:$0xff]
  %v186 = vld [vmem:[%s3 + $0x38] sm:$0xff]
  %v187 = vld [vmem:[%s3 + $0x40] sm:$0xff]
  %v188 = vld [vmem:[%s3 + $0x48] sm:$0xff]
  %v189 = vld [vmem:[%s3 + $0x50] sm:$0xff]
  %v190 = vld [vmem:[%s3 + $0x58] sm:$0xff]
  %v191 = vld [vmem:[%s3 + $0x60] sm:$0xff]
  %v192 = vld [vmem:[%s3 + $0x68] sm:$0xff]
  %v193 = vld [vmem:[%s3 + $0x70] sm:$0xff]
  %v194 = vld [vmem:[%s3 + $0x78] sm:$0xff]
  %v195 = vld [vmem:[%s4] sm:$0x1]
  %v197 = vperm.slane %v195, 0
  %199 = vmatpush.msra.mxu0 %v194
  %200 = vmatpush.msra.mxu0 %v193
  %201 = vmatpush.msra.mxu0 %v192
  %202 = vmatpush.msra.mxu0 %v191
  %203 = vmatpush.msra.mxu0 %v190
  %204 = vmatpush.msra.mxu0 %v189
  %205 = vmatpush.msra.mxu0 %v188
  %206 = vmatpush.msra.mxu0 %v187
  %207 = vmatpush.msra.mxu0 %v186
  %208 = vmatpush.msra.mxu0 %v185
  %209 = vmatpush.msra.mxu0 %v184
  %210 = vmatpush.msra.mxu0 %v183
  %211 = vmatpush.msra.mxu0 %v182
  %212 = vmatpush.msra.mxu0 %v181
  %213 = vmatpush.msra.mxu0 %v180
  %214 = vmatpush.msra.mxu0 %v179
  %215 = vmatmul.f32.gmra.mxu0 %v178
  %v216 = vpop.f32.mrf.mxu0
  %v217 = vadd.f32 %v197, %v216
  %218 = vdwg.mxu0
  %v219 = vmax.f32 %v217, 0.0
  %v220 = vld [vmem:[%s5] sm:$0xff]
  %v221 = vld [vmem:[%s5 + $0x8] sm:$0xff]
  %v222 = vld [vmem:[%s5 + $0x10] sm:$0xff]
  %v223 = vld [vmem:[%s5 + $0x18] sm:$0xff]
  %v224 = vld [vmem:[%s5 + $0x20] sm:$0xff]
  %v225 = vld [vmem:[%s5 + $0x28] sm:$0xff]
  %v226 = vld [vmem:[%s5 + $0x30] sm:$0xff]
  %v227 = vld [vmem:[%s5 + $0x38] sm:$0xff]
  %v228 = vld [vmem:[%s5 + $0x40] sm:$0xff]
  %v229 = vld [vmem:[%s5 + $0x48] sm:$0xff]
  %v230 = vld [vmem:[%s5 + $0x50] sm:$0xff]
  %v231 = vld [vmem:[%s5 + $0x58] sm:$0xff]
  %v232 = vld [vmem:[%s5 + $0x60] sm:$0xff]
  %v233 = vld [vmem:[%s5 + $0x68] sm:$0xff]
  %v234 = vld [vmem:[%s5 + $0x70] sm:$0xff]
  %v235 = vld [vmem:[%s5 + $0x78] sm:$0xff]
  %v236 = vld [vmem:[%s6] sm:$0x1]
  %v238 = vperm.slane %v236, 0
  %240 = vmatpush.msra.mxu0 %v235
  %241 = vmatpush.msra.mxu0 %v234
  %242 = vmatpush.msra.mxu0 %v233
  %243 = vmatpush.msra.mxu0 %v232
  %244 = vmatpush.msra.mxu0 %v231
  %245 = vmatpush.msra.mxu0 %v230
  %246 = vmatpush.msra.mxu0 %v229
  %247 = vmatpush.msra.mxu0 %v228
  %248 = vmatpush.msra.mxu0 %v227
  %249 = vmatpush.msra.mxu0 %v226
  %250 = vmatpush.msra.mxu0 %v225
  %251 = vmatpush.msra.mxu0 %v224
  %252 = vmatpush.msra.mxu0 %v223
  %253 = vmatpush.msra.mxu0 %v222
  %254 = vmatpush.msra.mxu0 %v221
  %255 = vmatpush.msra.mxu0 %v220
  %256 = vmatmul.f32.gmra.mxu0 %v219
  %v257 = vpop.f32.mrf.mxu0
  %v258 = vadd.f32 %v238, %v257
  %259 = vdwg.mxu0
  %260 = vst [vmem:[%s7] sm:$0xff] %v258
  // Predicated region
  $region30: #{net_forward.5} parent=0 // pred_check
    _
  $region31: #{net_forward.5} parent=0 // pred_check_branch
    %262 = sbr.rel (0) target = $region33
  $region32: #{net_forward.5} parent=0 // pred_region
    _
  $region33: #{net_forward.5} parent=0 // pred_fallthru
    _
  // Predicated region
  $region34: #{net_forward.5} parent=0 // pred_check
    _
  $region35: #{net_forward.5} parent=0 // pred_check_branch
    %264 = sbr.rel (0) target = $region37
  $region36: #{net_forward.5} parent=0 // pred_region
    _
  $region37: #{net_forward.5} parent=0 // pred_fallthru
    _

</llo_original>
